<compile_context>
chip_gen: v7x
topology: tpu7x:2x2x1
jax: 0.10.0
libtpu: 0.0.40
codegen_flags: <defaults>
</compile_context>

<pallas_src>
import jax
import jax.numpy as jnp
from jax.experimental import pallas as pl
from jax.experimental.pallas import tpu as pltpu


def sent_classifier_kernel(
    x_ref,       # (TB*S, D) bf16  embedded words for this batch tile (pre-flattened)
    wproj_ref,   # (D, H)    bf16  word projection
    bproj_ref,   # (1, H)    f32
    wattn_ref,   # (1, H)    f32   attention scoring vector
    wdense_ref,  # (H, H)    bf16  classification head dense
    bdense_ref,  # (1, H)    f32
    wout_ref,    # (H, L)    bf16  classification head out_proj
    bout_ref,    # (1, L)    f32
    out_ref,     # (TB, S+L) f32   attn weights in [:, :S], logits in [:, S:]
):
    H = wproj_ref.shape[1]
    L = wout_ref.shape[1]
    TB = out_ref.shape[0]
    S = out_ref.shape[1] - L

    # ---- word feature extractor: whole batch tile as one MXU M dimension -----
    # TODO(synk): the reference WordSequence may use an LSTM/char extractor; a
    # recurrent cell has no clean single-Pallas-kernel equivalent, so a
    # per-token Linear+tanh feature extractor is used instead.
    h = jnp.tanh(
        jnp.dot(x_ref[...], wproj_ref[...], preferred_element_type=jnp.float32)
        + bproj_ref[...]
    )                                        # f32 (TB*S, H)
    h3 = h.reshape(TB, S, H)                 # the single unavoidable relayout

    # ---- attention scores + per-sentence softmax (lane-oriented (TB, S)) -----
    # TODO(synk): no pad-token mask in the softmax; a real NCRF++ batch would
    # mask word id 0 before the max/exp.
    scores = jnp.sum(h3 * wattn_ref[...].reshape(1, 1, H), axis=-1)     # (TB, S)
    m = jnp.max(scores, axis=-1, keepdims=True)
    e = jnp.exp(scores - m)
    denom = jnp.sum(e, axis=-1, keepdims=True)
    inv = pl.reciprocal(denom, approx=True)
    inv = inv * (2.0 - denom * inv)          # one Newton step -> near-exact 1/denom
    attn = e * inv                                                       # (TB, S)

    # ---- weighted sum over the sequence -> sentence representations ----------
    rep = jnp.sum(attn[:, :, None] * h3, axis=1)                         # (TB, H)

    # ---- classification head, batched over the TB sentences ------------------
    z = jnp.tanh(
        jnp.dot(rep.astype(wdense_ref.dtype), wdense_ref[...],
                preferred_element_type=jnp.float32)
        + bdense_ref[...]
    )                                                                    # (TB, H)
    logits = (
        jnp.dot(z.astype(wout_ref.dtype), wout_ref[...],
                preferred_element_type=jnp.float32)
        + bout_ref[...]
    )                                                                    # (TB, L)

    # single lane-contiguous output slab -> one output DMA per grid step
    out_ref[:, 0:S] = attn.astype(out_ref.dtype)
    out_ref[:, S:S + L] = logits.astype(out_ref.dtype)


def _pick_batch_tile(batch):
    """v7x has 2 TensorCores/chip -> keep 2 parallel grid blocks; v5e/v6e have
    a single TC -> grid=(1,) avoids per-step / pipeline overhead."""
    try:
        kind = jax.devices()[0].device_kind.lower()
    except Exception:
        kind = ""
    if "v7" in kind and batch % 2 == 0:
        return batch // 2
    return batch


def sent_classifier_forward(x_emb, params, *, tb=None):
    """x_emb: (B, S, D) bf16 embedded words. Returns (tag_seq, logits, attn)."""
    B, S, D = x_emb.shape
    H = params["wproj"].shape[1]
    L = params["wout"].shape[1]

    if tb is None:
        tb = _pick_batch_tile(B)
    tb = min(tb, B)
    assert B % tb == 0, "batch must be divisible by the batch tile size"
    grid = (B // tb,)

    # Flatten (B,S,D) -> (B*S,D) in HBM (free); kernel gets a 2-D block so no
    # in-kernel relayout on x. Table is stored bf16, so astype is a no-op.
    x_flat = x_emb.reshape(B * S, D).astype(jnp.bfloat16)

    rep_spec = lambda shape: pl.BlockSpec(shape, lambda b: tuple(0 for _ in shape))

    # Honest VMEM budget derived from actual block sizes (+8x headroom for
    # double buffering / pipeline state), instead of a blanket 32 MiB.
    block_bytes = (
        tb * S * D * 2                     # x tile (bf16)
        + (D * H + H * H + H * L) * 2      # bf16 weights
        + (3 * H + L) * 4                  # f32 biases + attention vector
        + tb * (S + L) * 4                 # fused output tile
    )
    vmem_limit = int(max(2 * 1024 * 1024, 8 * block_bytes))

    fused = pl.pallas_call(
        sent_classifier_kernel,
        out_shape=jax.ShapeDtypeStruct((B, S + L), jnp.float32),
        grid_spec=pltpu.PrefetchScalarGridSpec(
            num_scalar_prefetch=0,
            grid=grid,
            in_specs=[
                pl.BlockSpec((tb * S, D), lambda b: (b, 0)),
                rep_spec((D, H)),
                rep_spec((1, H)),
                rep_spec((1, H)),
                rep_spec((H, H)),
                rep_spec((1, H)),
                rep_spec((H, L)),
                rep_spec((1, L)),
            ],
            out_specs=pl.BlockSpec((tb, S + L), lambda b: (b, 0)),
        ),
        compiler_params=pltpu.CompilerParams(
            dimension_semantics=("parallel",),
            vmem_limit_bytes=vmem_limit,
        ),
    )(
        x_flat,
        params["wproj"], params["bproj"], params["wattn"],
        params["wdense"], params["bdense"], params["wout"], params["bout"],
    )

    attn = fused[:, :S]
    logits = fused[:, S:]

    # outs.view(batch_size, -1); _, tag_seq = torch.max(outs, 1)
    tag_seq = jnp.argmax(logits.reshape(B, -1), axis=1)
    return tag_seq, logits, attn


def init_params(key, vocab, D, H, L):
    ks = jax.random.split(key, 8)
    scale = 0.1
    bf = lambda a: a.astype(jnp.bfloat16)
    return {
        # bf16 once at init: gather produces bf16 directly (no per-call astype)
        "embed": bf(jax.random.normal(ks[0], (vocab, D), jnp.float32) * scale),
        "wproj": bf(jax.random.normal(ks[1], (D, H), jnp.float32) * scale),
        "bproj": jax.random.normal(ks[2], (1, H), jnp.float32) * scale,
        "wattn": jax.random.normal(ks[3], (1, H), jnp.float32) * scale,
        "wdense": bf(jax.random.normal(ks[4], (H, H), jnp.float32) * scale),
        "bdense": jax.random.normal(ks[5], (1, H), jnp.float32) * scale,
        "wout": bf(jax.random.normal(ks[6], (H, L), jnp.float32) * scale),
        "bout": jax.random.normal(ks[7], (1, L), jnp.float32) * scale,
    }


def ref_forward(x_emb, params):
    """Pure-JAX reference of the same math (mirrors the kernel's bf16 matmuls)."""
    B, S, D = x_emb.shape
    xb = x_emb.astype(jnp.bfloat16).reshape(B * S, D)
    h = jnp.tanh(
        jnp.dot(xb, params["wproj"].astype(jnp.bfloat16),
                preferred_element_type=jnp.float32)
        + params["bproj"]
    ).reshape(B, S, -1)
    s = jnp.sum(h * params["wattn"][None], axis=-1)                # (B, S)
    a = jax.nn.softmax(s, axis=-1)
    rep = jnp.sum(a[..., None] * h, axis=1)                        # (B, H)
    z = jnp.tanh(
        jnp.dot(rep.astype(jnp.bfloat16),
                params["wdense"].astype(jnp.bfloat16),
                preferred_element_type=jnp.float32)
        + params["bdense"]
    )
    lg = (
        jnp.dot(z.astype(jnp.bfloat16),
                params["wout"].astype(jnp.bfloat16),
                preferred_element_type=jnp.float32)
        + params["bout"]
    )
    return lg, a


if __name__ == "__main__":
    B, S, D, H, L, VOCAB = 16, 16, 64, 64, 8, 50

    key = jax.random.PRNGKey(0)
    k_param, k_words = jax.random.split(key)
    params = init_params(k_param, VOCAB, D, H, L)

    # word_inputs: (B, S) int token ids (0 is pad in the reference; avoid it here)
    word_inputs = jax.random.randint(k_words, (B, S), 1, VOCAB, dtype=jnp.int32)

    # embedding lookup (glue) -> already bf16, no extra cast pass
    x_emb = jnp.take(params["embed"], word_inputs, axis=0)         # (B, S, D) bf16

    tag_seq, logits, attn = sent_classifier_forward(x_emb, params)
    jax.block_until_ready((tag_seq, logits, attn))

    # lightweight sanity check against a pure-JAX reference of the same math
    ref_logits, ref_attn = ref_forward(x_emb, params)

    assert jnp.allclose(logits, ref_logits, atol=1e-4, rtol=1e-3)
    assert jnp.allclose(attn, ref_attn, atol=1e-4, rtol=1e-3)
    assert jnp.allclose(attn.sum(axis=-1), 1.0, atol=1e-4)
    assert bool(jnp.all(tag_seq == jnp.argmax(logits, axis=1)))

    # compare predicted tags to the reference only where the decision is decisive
    ref_tags = jnp.argmax(ref_logits, axis=1)
    sorted_ref = jnp.sort(ref_logits, axis=1)
    gap = sorted_ref[:, -1] - sorted_ref[:, -2]
    assert bool(jnp.all(jnp.where(gap > 1e-3, tag_seq == ref_tags, True)))

    print("KERNEL_OK")
</pallas_src>

<mosaic_0001>
module attributes {stable_mosaic.version = 11 : i64} {
  func.func @sent_classifier_kernel(%arg0: i32, %arg1: memref<256x64xbf16, #tpu.memory_space<vmem>>, %arg2: memref<64x64xbf16, #tpu.memory_space<vmem>>, %arg3: memref<1x64xf32, #tpu.memory_space<vmem>>, %arg4: memref<1x64xf32, #tpu.memory_space<vmem>>, %arg5: memref<64x64xbf16, #tpu.memory_space<vmem>>, %arg6: memref<1x64xf32, #tpu.memory_space<vmem>>, %arg7: memref<64x8xbf16, #tpu.memory_space<vmem>>, %arg8: memref<1x8xf32, #tpu.memory_space<vmem>>, %arg9: memref<16x24xf32, #tpu.memory_space<vmem>>) attributes {dimension_semantics = [#tpu.dimension_semantics<parallel>], iteration_bounds = array<i64: 1>, scalar_prefetch = 0 : i64, scratch_operands = 0 : i64, tpu.core_type = #tpu.core_type<tc>, window_params = [{transform_indices = @transform_0, window_bounds = array<i64: 256, 64>}, {pipeline_mode = #tpu.pipeline_mode<synchronous>, transform_indices = @transform_1, window_bounds = array<i64: 64, 64>}, {pipeline_mode = #tpu.pipeline_mode<synchronous>, transform_indices = @transform_2, window_bounds = array<i64: 1, 64>}, {pipeline_mode = #tpu.pipeline_mode<synchronous>, transform_indices = @transform_3, window_bounds = array<i64: 1, 64>}, {pipeline_mode = #tpu.pipeline_mode<synchronous>, transform_indices = @transform_4, window_bounds = array<i64: 64, 64>}, {pipeline_mode = #tpu.pipeline_mode<synchronous>, transform_indices = @transform_5, window_bounds = array<i64: 1, 64>}, {pipeline_mode = #tpu.pipeline_mode<synchronous>, transform_indices = @transform_6, window_bounds = array<i64: 64, 8>}, {pipeline_mode = #tpu.pipeline_mode<synchronous>, transform_indices = @transform_7, window_bounds = array<i64: 1, 8>}, {transform_indices = @transform_8, window_bounds = array<i64: 16, 24>}]} {
    %c0 = arith.constant 0 : index
    %c0_0 = arith.constant 0 : index
    %0 = vector.load %arg1[%c0, %c0_0] : memref<256x64xbf16, #tpu.memory_space<vmem>>, vector<256x64xbf16>
    %c0_1 = arith.constant 0 : index
    %c0_2 = arith.constant 0 : index
    %1 = vector.load %arg2[%c0_1, %c0_2] : memref<64x64xbf16, #tpu.memory_space<vmem>>, vector<64x64xbf16>
    %cst = arith.constant dense<0.000000e+00> : vector<256x64xf32>
    %2 = tpu.matmul %0, %1, %cst {dimension_numbers = #tpu.dot_dimension_numbers<[1], [0], [0], [1], [0, 0, 1, 1], [], []>} : vector<256x64xbf16>, vector<64x64xbf16>, vector<256x64xf32> -> vector<256x64xf32>
    %c0_3 = arith.constant 0 : index
    %c0_4 = arith.constant 0 : index
    %3 = vector.load %arg3[%c0_3, %c0_4] : memref<1x64xf32, #tpu.memory_space<vmem>>, vector<1x64xf32>
    %4 = vector.broadcast %3 : vector<1x64xf32> to vector<256x64xf32>
    %5 = arith.addf %2, %4 : vector<256x64xf32>
    %6 = math.tanh %5 : vector<256x64xf32>
    %7 = vector.shape_cast %6 : vector<256x64xf32> to vector<16x16x64xf32>
    %c0_5 = arith.constant 0 : index
    %c0_6 = arith.constant 0 : index
    %8 = vector.load %arg4[%c0_5, %c0_6] : memref<1x64xf32, #tpu.memory_space<vmem>>, vector<1x64xf32>
    %9 = vector.shape_cast %8 : vector<1x64xf32> to vector<1x1x64xf32>
    %10 = vector.broadcast %9 : vector<1x1x64xf32> to vector<16x16x64xf32>
    %11 = arith.mulf %7, %10 : vector<16x16x64xf32>
    %cst_7 = arith.constant dense<0.000000e+00> : vector<16x16xf32>
    %12 = vector.multi_reduction <add>, %11, %cst_7 [2] : vector<16x16x64xf32> to vector<16x16xf32>
    %cst_8 = arith.constant dense<0xFF800000> : vector<16xf32>
    %13 = vector.multi_reduction <maximumf>, %12, %cst_8 [1] : vector<16x16xf32> to vector<16xf32>
    %14 = vector.shape_cast %13 : vector<16xf32> to vector<16x1xf32>
    %15 = vector.broadcast %14 : vector<16x1xf32> to vector<16x16xf32>
    %16 = arith.subf %12, %15 : vector<16x16xf32>
    %17 = math.exp %16 : vector<16x16xf32>
    %cst_9 = arith.constant dense<0.000000e+00> : vector<16xf32>
    %18 = vector.multi_reduction <add>, %17, %cst_9 [1] : vector<16x16xf32> to vector<16xf32>
    %19 = vector.shape_cast %18 : vector<16xf32> to vector<16x1xf32>
    %20 = tpu.reciprocal %19 {approx = true} : vector<16x1xf32> -> vector<16x1xf32>
    %21 = arith.mulf %19, %20 : vector<16x1xf32>
    %cst_10 = arith.constant 2.000000e+00 : f32
    %22 = vector.broadcast %cst_10 : f32 to vector<16x1xf32>
    %23 = arith.subf %22, %21 : vector<16x1xf32>
    %24 = arith.mulf %20, %23 : vector<16x1xf32>
    %25 = vector.broadcast %24 : vector<16x1xf32> to vector<16x16xf32>
    %26 = arith.mulf %17, %25 : vector<16x16xf32>
    %27 = vector.shape_cast %26 : vector<16x16xf32> to vector<16x16x1xf32>
    %28 = vector.broadcast %27 : vector<16x16x1xf32> to vector<16x16x64xf32>
    %29 = arith.mulf %28, %7 : vector<16x16x64xf32>
    %cst_11 = arith.constant dense<0.000000e+00> : vector<16x64xf32>
    %30 = vector.multi_reduction <add>, %29, %cst_11 [1] : vector<16x16x64xf32> to vector<16x64xf32>
    %31 = arith.truncf %30 : vector<16x64xf32> to vector<16x64xbf16>
    %c0_12 = arith.constant 0 : index
    %c0_13 = arith.constant 0 : index
    %32 = vector.load %arg5[%c0_12, %c0_13] : memref<64x64xbf16, #tpu.memory_space<vmem>>, vector<64x64xbf16>
    %cst_14 = arith.constant dense<0.000000e+00> : vector<16x64xf32>
    %33 = tpu.matmul %31, %32, %cst_14 {dimension_numbers = #tpu.dot_dimension_numbers<[1], [0], [0], [1], [0, 0, 1, 1], [], []>} : vector<16x64xbf16>, vector<64x64xbf16>, vector<16x64xf32> -> vector<16x64xf32>
    %c0_15 = arith.constant 0 : index
    %c0_16 = arith.constant 0 : index
    %34 = vector.load %arg6[%c0_15, %c0_16] : memref<1x64xf32, #tpu.memory_space<vmem>>, vector<1x64xf32>
    %35 = vector.broadcast %34 : vector<1x64xf32> to vector<16x64xf32>
    %36 = arith.addf %33, %35 : vector<16x64xf32>
    %37 = math.tanh %36 : vector<16x64xf32>
    %38 = arith.truncf %37 : vector<16x64xf32> to vector<16x64xbf16>
    %c0_17 = arith.constant 0 : index
    %c0_18 = arith.constant 0 : index
    %39 = vector.load %arg7[%c0_17, %c0_18] : memref<64x8xbf16, #tpu.memory_space<vmem>>, vector<64x8xbf16>
    %cst_19 = arith.constant dense<0.000000e+00> : vector<16x8xf32>
    %40 = tpu.matmul %38, %39, %cst_19 {dimension_numbers = #tpu.dot_dimension_numbers<[1], [0], [0], [1], [0, 0, 1, 1], [], []>} : vector<16x64xbf16>, vector<64x8xbf16>, vector<16x8xf32> -> vector<16x8xf32>
    %c0_20 = arith.constant 0 : index
    %c0_21 = arith.constant 0 : index
    %41 = vector.load %arg8[%c0_20, %c0_21] : memref<1x8xf32, #tpu.memory_space<vmem>>, vector<1x8xf32>
    %42 = vector.broadcast %41 : vector<1x8xf32> to vector<16x8xf32>
    %43 = arith.addf %40, %42 : vector<16x8xf32>
    %c0_22 = arith.constant 0 : index
    %c0_23 = arith.constant 0 : index
    %44 = vector.load %arg9[%c0_22, %c0_23] : memref<16x24xf32, #tpu.memory_space<vmem>>, vector<16x16xf32>
    tpu.vector_store %arg9[%c0_22, %c0_23], %26 {strides = array<i32>} : memref<16x24xf32, #tpu.memory_space<vmem>>, vector<16x16xf32>,
    %c0_24 = arith.constant 0 : index
    %c16 = arith.constant 16 : index
    %45 = vector.load %arg9[%c0_24, %c16] : memref<16x24xf32, #tpu.memory_space<vmem>>, vector<16x8xf32>
    tpu.vector_store %arg9[%c0_24, %c16], %43 {strides = array<i32>} : memref<16x24xf32, #tpu.memory_space<vmem>>, vector<16x8xf32>,
    return
  }
  func.func @transform_0(%arg0: i32) -> (i32, i32) {
    %c0_i32 = arith.constant 0 : i32
    %c0_i32_0 = arith.constant 0 : i32
    return %arg0, %c0_i32 : i32, i32
  }
  func.func @transform_1(%arg0: i32) -> (i32, i32) {
    %c0_i32 = arith.constant 0 : i32
    %c0_i32_0 = arith.constant 0 : i32
    %c0_i32_1 = arith.constant 0 : i32
    return %c0_i32, %c0_i32_0 : i32, i32
  }
  func.func @transform_2(%arg0: i32) -> (i32, i32) {
    %c0_i32 = arith.constant 0 : i32
    %c0_i32_0 = arith.constant 0 : i32
    %c0_i32_1 = arith.constant 0 : i32
    return %c0_i32, %c0_i32_0 : i32, i32
  }
  func.func @transform_3(%arg0: i32) -> (i32, i32) {
    %c0_i32 = arith.constant 0 : i32
    %c0_i32_0 = arith.constant 0 : i32
    %c0_i32_1 = arith.constant 0 : i32
    return %c0_i32, %c0_i32_0 : i32, i32
  }
  func.func @transform_4(%arg0: i32) -> (i32, i32) {
    %c0_i32 = arith.constant 0 : i32
    %c0_i32_0 = arith.constant 0 : i32
    %c0_i32_1 = arith.constant 0 : i32
    return %c0_i32, %c0_i32_0 : i32, i32
  }
  func.func @transform_5(%arg0: i32) -> (i32, i32) {
    %c0_i32 = arith.constant 0 : i32
    %c0_i32_0 = arith.constant 0 : i32
    %c0_i32_1 = arith.constant 0 : i32
    return %c0_i32, %c0_i32_0 : i32, i32
  }
  func.func @transform_6(%arg0: i32) -> (i32, i32) {
    %c0_i32 = arith.constant 0 : i32
    %c0_i32_0 = arith.constant 0 : i32
    %c0_i32_1 = arith.constant 0 : i32
    return %c0_i32, %c0_i32_0 : i32, i32
  }
  func.func @transform_7(%arg0: i32) -> (i32, i32) {
    %c0_i32 = arith.constant 0 : i32
    %c0_i32_0 = arith.constant 0 : i32
    %c0_i32_1 = arith.constant 0 : i32
    return %c0_i32, %c0_i32_0 : i32, i32
  }
  func.func @transform_8(%arg0: i32) -> (i32, i32) {
    %c0_i32 = arith.constant 0 : i32
    %c0_i32_0 = arith.constant 0 : i32
    return %arg0, %c0_i32 : i32, i32
  }
}

</mosaic_0001>

<llo_original>
// kernel: tpu_custom_call.1
$region0: #{tpu_custom_call.1}
  #allocation0 [shape = 'u32[]', space=smem, size = 0x4, offset = 0x4, fixed_abs, tag = 'smem constant byte address 0x4 - core index']
  #allocation1 [shape = 'u32[144,128]{1,0:T(1,128)}', space=vmem, size = 0x12000, scoped, tag = 'internal scratch']
  %s0 = inlined_call_operand.vmem [shape: bf16[256,64], index: 0, kind: input, shape index: {}]
  %s1 = inlined_call_operand.vmem [shape: bf16[64,64], index: 1, kind: input, shape index: {}]
  %s2 = inlined_call_operand.vmem [shape: f32[1,64], index: 2, kind: input, shape index: {}]
  %s3 = inlined_call_operand.vmem [shape: f32[1,64], index: 3, kind: input, shape index: {}]
  %s4 = inlined_call_operand.vmem [shape: bf16[64,64], index: 4, kind: input, shape index: {}]
  %s5 = inlined_call_operand.vmem [shape: f32[1,64], index: 5, kind: input, shape index: {}]
  %s6 = inlined_call_operand.vmem [shape: bf16[64,8], index: 6, kind: input, shape index: {}]
  %s7 = inlined_call_operand.vmem [shape: f32[1,8], index: 7, kind: input, shape index: {}]
  %s8 = inlined_call_operand.hbm [shape: f32[16,24], index: 8, kind: output, shape index: {}]
  %s9 = sld [smem:[#allocation0]]
  $region42: #{tpu_custom_call.1} parent=0
    _
  %s11 = ssub.s32 1, %s9
  %s12 = scalar_select 0, %s11, %s9
  $region1: #{tpu_custom_call.1} parent=0
    #allocation2 [shape = 'u8[8192]{0}', space=vmem, size = 0x2000, scoped, tag = 'output window, operand 0, single buffered']
    #allocation3 [shape = 's32[1]{0}', space=sflag, size = 0x4, scoped, tag = 'scoped memory for tpu_custom_call.1']
    %13 = vsyncpa [#allocation3], 0
    // Predicated region
    $region2: #{tpu_custom_call.1} parent=1 // pred_check
      _
    $region3: #{tpu_custom_call.1} parent=1 // pred_check_branch
      %15 = sbr.rel (0) target = $region5
    $region4: #{tpu_custom_call.1} parent=1 // pred_region
      _
    $region5: #{tpu_custom_call.1} parent=1 // pred_fallthru
      _
    // Predicated region
    $region6: #{tpu_custom_call.1} parent=1 // pred_check
      _
    $region7: #{tpu_custom_call.1} parent=1 // pred_check_branch
      %17 = sbr.rel (0) target = $region9
    $region8: #{tpu_custom_call.1} parent=1 // pred_region
      _
    $region9: #{tpu_custom_call.1} parent=1 // pred_fallthru
      _
    // Predicated region
    $region10: #{tpu_custom_call.1} parent=1 // pred_check
      _
    $region11: #{tpu_custom_call.1} parent=1 // pred_check_branch
      %19 = sbr.rel (0) target = $region13
    $region12: #{tpu_custom_call.1} parent=1 // pred_region
      _
    $region13: #{tpu_custom_call.1} parent=1 // pred_fallthru
      _
    // Predicated region
    $region14: #{tpu_custom_call.1} parent=1 // pred_check
      _
    $region15: #{tpu_custom_call.1} parent=1 // pred_check_branch
      %21 = sbr.rel (0) target = $region17
    $region16: #{tpu_custom_call.1} parent=1 // pred_region
      _
    $region17: #{tpu_custom_call.1} parent=1 // pred_fallthru
      _
    // Predicated region
    $region18: #{tpu_custom_call.1} parent=1 // pred_check
      _
    $region19: #{tpu_custom_call.1} parent=1 // pred_check_branch
      %23 = sbr.rel (0) target = $region21
    $region20: #{tpu_custom_call.1} parent=1 // pred_region
      _
    $region21: #{tpu_custom_call.1} parent=1 // pred_fallthru
      _
    // Predicated region
    $region22: #{tpu_custom_call.1} parent=1 // pred_check
      _
    $region23: #{tpu_custom_call.1} parent=1 // pred_check_branch
      %25 = sbr.rel (0) target = $region25
    $region24: #{tpu_custom_call.1} parent=1 // pred_region
      _
    $region25: #{tpu_custom_call.1} parent=1 // pred_fallthru
      _
    // Predicated region
    $region26: #{tpu_custom_call.1} parent=1 // pred_check
      _
    $region27: #{tpu_custom_call.1} parent=1 // pred_check_branch
      %27 = sbr.rel (0) target = $region29
    $region28: #{tpu_custom_call.1} parent=1 // pred_region
      _
    $region29: #{tpu_custom_call.1} parent=1 // pred_fallthru
      _
    // Predicated region
    $region30: #{tpu_custom_call.1} parent=1 // pred_check
      _
    $region31: #{tpu_custom_call.1} parent=1 // pred_check_branch
      %29 = sbr.rel (0) target = $region33
    $region32: #{tpu_custom_call.1} parent=1 // pred_region
      _
    $region33: #{tpu_custom_call.1} parent=1 // pred_fallthru
      _
    %v31 = vld [vmem:[%s0] sm:$0xf]
    %v32 = vld [vmem:[%s0 + $0x4] sm:$0xf]
    %v33 = vld [vmem:[%s0 + $0x8] sm:$0xf]
    %v34 = vld [vmem:[%s0 + $0xc] sm:$0xf]
    %v35 = vld [vmem:[%s0 + $0x10] sm:$0xf]
    %v36 = vld [vmem:[%s0 + $0x14] sm:$0xf]
    %v37 = vld [vmem:[%s0 + $0x18] sm:$0xf]
    %v38 = vld [vmem:[%s0 + $0x1c] sm:$0xf]
    %v39 = vld [vmem:[%s0 + $0x20] sm:$0xf]
    %v40 = vld [vmem:[%s0 + $0x24] sm:$0xf]
    %v41 = vld [vmem:[%s0 + $0x28] sm:$0xf]
    %v42 = vld [vmem:[%s0 + $0x2c] sm:$0xf]
    %v43 = vld [vmem:[%s0 + $0x30] sm:$0xf]
    %v44 = vld [vmem:[%s0 + $0x34] sm:$0xf]
    %v45 = vld [vmem:[%s0 + $0x38] sm:$0xf]
    %v46 = vld [vmem:[%s0 + $0x3c] sm:$0xf]
    %v47 = vld [vmem:[%s0 + $0x40] sm:$0xf]
    %v48 = vld [vmem:[%s0 + $0x44] sm:$0xf]
    %v49 = vld [vmem:[%s0 + $0x48] sm:$0xf]
    %v50 = vld [vmem:[%s0 + $0x4c] sm:$0xf]
    %v51 = vld [vmem:[%s0 + $0x50] sm:$0xf]
    %v52 = vld [vmem:[%s0 + $0x54] sm:$0xf]
    %v53 = vld [vmem:[%s0 + $0x58] sm:$0xf]
    %v54 = vld [vmem:[%s0 + $0x5c] sm:$0xf]
    %v55 = vld [vmem:[%s0 + $0x60] sm:$0xf]
    %v56 = vld [vmem:[%s0 + $0x64] sm:$0xf]
    %v57 = vld [vmem:[%s0 + $0x68] sm:$0xf]
    %v58 = vld [vmem:[%s0 + $0x6c] sm:$0xf]
    %v59 = vld [vmem:[%s0 + $0x70] sm:$0xf]
    %v60 = vld [vmem:[%s0 + $0x74] sm:$0xf]
    %v61 = vld [vmem:[%s0 + $0x78] sm:$0xf]
    %v62 = vld [vmem:[%s0 + $0x7c] sm:$0xf]
    %v63 = vld [vmem:[%s1] sm:$0xf]
    %v64 = vld [vmem:[%s1 + $0x4] sm:$0xf]
    %v65 = vld [vmem:[%s1 + $0x8] sm:$0xf]
    %v66 = vld [vmem:[%s1 + $0xc] sm:$0xf]
    %v67 = vld [vmem:[%s1 + $0x10] sm:$0xf]
    %v68 = vld [vmem:[%s1 + $0x14] sm:$0xf]
    %v69 = vld [vmem:[%s1 + $0x18] sm:$0xf]
    %v70 = vld [vmem:[%s1 + $0x1c] sm:$0xf]
    %v71 = vld [vmem:[%s2] sm:$0x1]
    %v73 = vlaneseq
    %v74 = vshrl.u32 %v73, 7
    %v75 = vsub.s32 0, %v74
    %v76 = vrot.slane %v71, %v75
    %v110 = vunpack.c.l.b16 %v31
    %v111 = vunpack.c.l.b16 %v32
    %v112 = vunpack.c.l.b16 %v33
    %v113 = vunpack.c.l.b16 %v34
    %v114 = vunpack.c.l.b16 %v35
    %v115 = vunpack.c.l.b16 %v36
    %v116 = vunpack.c.l.b16 %v37
    %v117 = vunpack.c.l.b16 %v38
    %v118 = vunpack.c.l.b16 %v39
    %v119 = vunpack.c.l.b16 %v40
    %v120 = vunpack.c.l.b16 %v41
    %v121 = vunpack.c.l.b16 %v42
    %v122 = vunpack.c.l.b16 %v43
    %v123 = vunpack.c.l.b16 %v44
    %v124 = vunpack.c.l.b16 %v45
    %v125 = vunpack.c.l.b16 %v46
    %v126 = vunpack.c.l.b16 %v47
    %v127 = vunpack.c.l.b16 %v48
    %v128 = vunpack.c.l.b16 %v49
    %v129 = vunpack.c.l.b16 %v50
    %v130 = vunpack.c.l.b16 %v51
    %v131 = vunpack.c.l.b16 %v52
    %v132 = vunpack.c.l.b16 %v53
    %v133 = vunpack.c.l.b16 %v54
    %v134 = vunpack.c.l.b16 %v55
    %v135 = vunpack.c.l.b16 %v56
    %v136 = vunpack.c.l.b16 %v57
    %v137 = vunpack.c.l.b16 %v58
    %v138 = vunpack.c.l.b16 %v59
    %v139 = vunpack.c.l.b16 %v60
    %v140 = vunpack.c.l.b16 %v61
    %v141 = vunpack.c.l.b16 %v62
    %v142 = vpack.c.b16 %v111, %v110
    %v143 = vpack.c.b16 %v113, %v112
    %v144 = vpack.c.b16 %v115, %v114
    %v145 = vpack.c.b16 %v117, %v116
    %v146 = vpack.c.b16 %v119, %v118
    %v147 = vpack.c.b16 %v121, %v120
    %v148 = vpack.c.b16 %v123, %v122
    %v149 = vpack.c.b16 %v125, %v124
    %v150 = vpack.c.b16 %v127, %v126
    %v151 = vpack.c.b16 %v129, %v128
    %v152 = vpack.c.b16 %v131, %v130
    %v153 = vpack.c.b16 %v133, %v132
    %v154 = vpack.c.b16 %v135, %v134
    %v155 = vpack.c.b16 %v137, %v136
    %v156 = vpack.c.b16 %v139, %v138
    %v157 = vpack.c.b16 %v141, %v140
    %v166 = vunpack.c.l.b16 %v63
    %v167 = vunpack.c.l.b16 %v64
    %v168 = vunpack.c.l.b16 %v65
    %v169 = vunpack.c.l.b16 %v66
    %v170 = vunpack.c.l.b16 %v67
    %v171 = vunpack.c.l.b16 %v68
    %v172 = vunpack.c.l.b16 %v69
    %v173 = vunpack.c.l.b16 %v70
    %v174 = vpack.c.b16 %v167, %v166
    %v175 = vpack.c.b16 %v169, %v168
    %v176 = vpack.c.b16 %v171, %v170
    %v177 = vpack.c.b16 %v173, %v172
    %vm182 = vcmask 523264
    %v184 = vsel %vm182, %v142, 0
    %v187 = vsel %vm182, %v143, 0
    %v190 = vsel %vm182, %v144, 0
    %v193 = vsel %vm182, %v145, 0
    %v196 = vsel %vm182, %v146, 0
    %v199 = vsel %vm182, %v147, 0
    %v202 = vsel %vm182, %v148, 0
    %v205 = vsel %vm182, %v149, 0
    %v208 = vsel %vm182, %v150, 0
    %v211 = vsel %vm182, %v151, 0
    %v214 = vsel %vm182, %v152, 0
    %v217 = vsel %vm182, %v153, 0
    %v220 = vsel %vm182, %v154, 0
    %v223 = vsel %vm182, %v155, 0
    %v226 = vsel %vm182, %v156, 0
    %v229 = vsel %vm182, %v157, 0
    %231 = vmatprep.subr.bf16.mxu0 0
    %232 = vmatpush1.bf16.msra.mxu0 %v174
    %233 = vmatprep.subr.bf16.mxu0 0
    %234 = vmatpush1.bf16.msra.mxu0 %v175
    %235 = vmatprep.subr.bf16.mxu0 0
    %236 = vmatpush1.bf16.msra.mxu0 %v176
    %237 = vmatprep.subr.bf16.mxu0 0
    %238 = vmatpush1.bf16.msra.mxu0 %v177
    %239 = vmatprep.subr.bf16.mxu0 0
    %240 = vmatpush1.bf16.msra.mxu0 0
    %241 = vmatprep.subr.bf16.mxu0 0
    %242 = vmatpush1.bf16.msra.mxu0 0
    %243 = vmatprep.subr.bf16.mxu0 0
    %244 = vmatpush1.bf16.msra.mxu0 0
    %245 = vmatprep.subr.bf16.mxu0 0
    %246 = vmatpush1.bf16.msra.mxu0 0
    %247 = vmatprep.subr.bf16.mxu0 0
    %248 = vmatpush1.bf16.msra.mxu0 0
    %249 = vmatprep.subr.bf16.mxu0 0
    %250 = vmatpush1.bf16.msra.mxu0 0
    %251 = vmatprep.subr.bf16.mxu0 0
    %252 = vmatpush1.bf16.msra.mxu0 0
    %253 = vmatprep.subr.bf16.mxu0 0
    %254 = vmatpush1.bf16.msra.mxu0 0
    %255 = vmatprep.subr.bf16.mxu0 0
    %256 = vmatpush1.bf16.msra.mxu0 0
    %257 = vmatprep.subr.bf16.mxu0 0
    %258 = vmatpush1.bf16.msra.mxu0 0
    %259 = vmatprep.subr.bf16.mxu0 0
    %260 = vmatpush1.bf16.msra.mxu0 0
    %261 = vmatprep.subr.bf16.mxu0 0
    %262 = vmatpush1.bf16.msra.mxu0 0
    %263 = vmatprep.mubr.bf16.mxu0 0
    %264 = vmatmul.mubr.bf16.gmra.mrb[0].mxu0 %v184
    %v265 = vpop.f32.mrb[0].mxu0
    %v266 = vadd.f32 %v76, %v265
    %v267 = vpop.f32.mrb[0].mxu0
    %v268 = vpop.f32.mrb[0].mxu0
    %v269 = vadd.f32 %v76, %v268
    %v270 = vpop.f32.mrb[0].mxu0
    %271 = vmatprep.mubr.bf16.mxu0 0
    %272 = vmatmul.mubr.bf16.gmra.mrb[0].mxu0 %v187
    %v273 = vpop.f32.mrb[0].mxu0
    %v274 = vadd.f32 %v76, %v273
    %v275 = vpop.f32.mrb[0].mxu0
    %v276 = vpop.f32.mrb[0].mxu0
    %v277 = vadd.f32 %v76, %v276
    %v278 = vpop.f32.mrb[0].mxu0
    %279 = vmatprep.mubr.bf16.mxu0 0
    %280 = vmatmul.mubr.bf16.gmra.mrb[0].mxu0 %v190
    %v281 = vpop.f32.mrb[0].mxu0
    %v282 = vadd.f32 %v76, %v281
    %v283 = vpop.f32.mrb[0].mxu0
    %v284 = vpop.f32.mrb[0].mxu0
    %v285 = vadd.f32 %v76, %v284
    %v286 = vpop.f32.mrb[0].mxu0
    %287 = vmatprep.mubr.bf16.mxu0 0
    %288 = vmatmul.mubr.bf16.gmra.mrb[0].mxu0 %v193
    %v289 = vpop.f32.mrb[0].mxu0
    %v290 = vadd.f32 %v76, %v289
    %v291 = vpop.f32.mrb[0].mxu0
    %v292 = vpop.f32.mrb[0].mxu0
    %v293 = vadd.f32 %v76, %v292
    %v294 = vpop.f32.mrb[0].mxu0
    %295 = vmatprep.mubr.bf16.mxu0 0
    %296 = vmatmul.mubr.bf16.gmra.mrb[0].mxu0 %v196
    %v297 = vpop.f32.mrb[0].mxu0
    %v298 = vadd.f32 %v76, %v297
    %v299 = vpop.f32.mrb[0].mxu0
    %v300 = vpop.f32.mrb[0].mxu0
    %v301 = vadd.f32 %v76, %v300
    %v302 = vpop.f32.mrb[0].mxu0
    %303 = vmatprep.mubr.bf16.mxu0 0
    %304 = vmatmul.mubr.bf16.gmra.mrb[0].mxu0 %v199
    %v305 = vpop.f32.mrb[0].mxu0
    %v306 = vadd.f32 %v76, %v305
    %v307 = vpop.f32.mrb[0].mxu0
    %v308 = vpop.f32.mrb[0].mxu0
    %v309 = vadd.f32 %v76, %v308
    %v310 = vpop.f32.mrb[0].mxu0
    %311 = vmatprep.mubr.bf16.mxu0 0
    %312 = vmatmul.mubr.bf16.gmra.mrb[0].mxu0 %v202
    %v313 = vpop.f32.mrb[0].mxu0
    %v314 = vadd.f32 %v76, %v313
    %v315 = vpop.f32.mrb[0].mxu0
    %v316 = vpop.f32.mrb[0].mxu0
    %v317 = vadd.f32 %v76, %v316
    %v318 = vpop.f32.mrb[0].mxu0
    %319 = vmatprep.mubr.bf16.mxu0 0
    %320 = vmatmul.mubr.bf16.gmra.mrb[0].mxu0 %v205
    %v321 = vpop.f32.mrb[0].mxu0
    %v322 = vadd.f32 %v76, %v321
    %v323 = vpop.f32.mrb[0].mxu0
    %v324 = vpop.f32.mrb[0].mxu0
    %v325 = vadd.f32 %v76, %v324
    %v326 = vpop.f32.mrb[0].mxu0
    %327 = vmatprep.mubr.bf16.mxu0 0
    %328 = vmatmul.mubr.bf16.gmra.mrb[0].mxu0 %v208
    %v329 = vpop.f32.mrb[0].mxu0
    %v330 = vadd.f32 %v76, %v329
    %v331 = vpop.f32.mrb[0].mxu0
    %v332 = vpop.f32.mrb[0].mxu0
    %v333 = vadd.f32 %v76, %v332
    %v334 = vpop.f32.mrb[0].mxu0
    %335 = vmatprep.mubr.bf16.mxu0 0
    %336 = vmatmul.mubr.bf16.gmra.mrb[0].mxu0 %v211
    %v337 = vpop.f32.mrb[0].mxu0
    %v338 = vadd.f32 %v76, %v337
    %v339 = vpop.f32.mrb[0].mxu0
    %v340 = vpop.f32.mrb[0].mxu0
    %v341 = vadd.f32 %v76, %v340
    %v342 = vpop.f32.mrb[0].mxu0
    %343 = vmatprep.mubr.bf16.mxu0 0
    %344 = vmatmul.mubr.bf16.gmra.mrb[0].mxu0 %v214
    %v345 = vpop.f32.mrb[0].mxu0
    %v346 = vadd.f32 %v76, %v345
    %v347 = vpop.f32.mrb[0].mxu0
    %v348 = vpop.f32.mrb[0].mxu0
    %v349 = vadd.f32 %v76, %v348
    %v350 = vpop.f32.mrb[0].mxu0
    %351 = vmatprep.mubr.bf16.mxu0 0
    %352 = vmatmul.mubr.bf16.gmra.mrb[0].mxu0 %v217
    %v353 = vpop.f32.mrb[0].mxu0
    %v354 = vadd.f32 %v76, %v353
    %v355 = vpop.f32.mrb[0].mxu0
    %v356 = vpop.f32.mrb[0].mxu0
    %v357 = vadd.f32 %v76, %v356
    %v358 = vpop.f32.mrb[0].mxu0
    %359 = vmatprep.mubr.bf16.mxu0 0
    %360 = vmatmul.mubr.bf16.gmra.mrb[0].mxu0 %v220
    %v361 = vpop.f32.mrb[0].mxu0
    %v362 = vadd.f32 %v76, %v361
    %v363 = vpop.f32.mrb[0].mxu0
    %v364 = vpop.f32.mrb[0].mxu0
    %v365 = vadd.f32 %v76, %v364
    %v366 = vpop.f32.mrb[0].mxu0
    %367 = vmatprep.mubr.bf16.mxu0 0
    %368 = vmatmul.mubr.bf16.gmra.mrb[0].mxu0 %v223
    %v369 = vpop.f32.mrb[0].mxu0
    %v370 = vadd.f32 %v76, %v369
    %v371 = vpop.f32.mrb[0].mxu0
    %v372 = vpop.f32.mrb[0].mxu0
    %v373 = vadd.f32 %v76, %v372
    %v374 = vpop.f32.mrb[0].mxu0
    %375 = vmatprep.mubr.bf16.mxu0 0
    %376 = vmatmul.mubr.bf16.gmra.mrb[0].mxu0 %v226
    %v377 = vpop.f32.mrb[0].mxu0
    %v378 = vadd.f32 %v76, %v377
    %v379 = vpop.f32.mrb[0].mxu0
    %v380 = vpop.f32.mrb[0].mxu0
    %v381 = vadd.f32 %v76, %v380
    %v382 = vpop.f32.mrb[0].mxu0
    %383 = vmatprep.mubr.bf16.mxu0 0
    %384 = vmatmul.mubr.bf16.gmra.mrb[0].mxu0 %v229
    %v385 = vpop.f32.mrb[0].mxu0
    %v386 = vadd.f32 %v76, %v385
    %v387 = vpop.f32.mrb[0].mxu0
    %v388 = vpop.f32.mrb[0].mxu0
    %v389 = vadd.f32 %v76, %v388
    %v390 = vpop.f32.mrb[0].mxu0
    %391 = vdwg.mxu0
    %v392 = vtanh.pop %v266
    %v393 = vtanh.pop %v269
    %v394 = vtanh.pop %v274
    %v395 = vtanh.pop %v277
    %v396 = vtanh.pop %v282
    %v397 = vtanh.pop %v285
    %v398 = vtanh.pop %v290
    %v399 = vtanh.pop %v293
    %v400 = vtanh.pop %v298
    %v401 = vtanh.pop %v301
    %v402 = vtanh.pop %v306
    %v403 = vtanh.pop %v309
    %v404 = vtanh.pop %v314
    %v405 = vtanh.pop %v317
    %v406 = vtanh.pop %v322
    %v407 = vtanh.pop %v325
    %v408 = vtanh.pop %v330
    %v409 = vtanh.pop %v333
    %v410 = vtanh.pop %v338
    %v411 = vtanh.pop %v341
    %v412 = vtanh.pop %v346
    %v413 = vtanh.pop %v349
    %v414 = vtanh.pop %v354
    %v415 = vtanh.pop %v357
    %v416 = vtanh.pop %v362
    %v417 = vtanh.pop %v365
    %v418 = vtanh.pop %v370
    %v419 = vtanh.pop %v373
    %v420 = vtanh.pop %v378
    %v421 = vtanh.pop %v381
    %v422 = vtanh.pop %v386
    %v423 = vtanh.pop %v389
    %v424 = vld [vmem:[%s3] sm:$0x1]
    %v426 = vlaneseq
    %v427 = vshrl.u32 %v426, 7
    %v428 = vsub.s32 0, %v427
    %v429 = vrot.slane %v424, %v428
    %v431 = vmul.f32 %v392, %v429
    %v432 = vmul.f32 %v393, %v429
    %v433 = vmul.f32 %v394, %v429
    %v434 = vmul.f32 %v395, %v429
    %v435 = vmul.f32 %v396, %v429
    %v436 = vmul.f32 %v397, %v429
    %v437 = vmul.f32 %v398, %v429
    %v438 = vmul.f32 %v399, %v429
    %v439 = vmul.f32 %v400, %v429
    %v440 = vmul.f32 %v401, %v429
    %v441 = vmul.f32 %v402, %v429
    %v442 = vmul.f32 %v403, %v429
    %v443 = vmul.f32 %v404, %v429
    %v444 = vmul.f32 %v405, %v429
    %v445 = vmul.f32 %v406, %v429
    %v446 = vmul.f32 %v407, %v429
    %v447 = vmul.f32 %v408, %v429
    %v448 = vmul.f32 %v409, %v429
    %v449 = vmul.f32 %v410, %v429
    %v450 = vmul.f32 %v411, %v429
    %v451 = vmul.f32 %v412, %v429
    %v452 = vmul.f32 %v413, %v429
    %v453 = vmul.f32 %v414, %v429
    %v454 = vmul.f32 %v415, %v429
    %v455 = vmul.f32 %v416, %v429
    %v456 = vmul.f32 %v417, %v429
    %v457 = vmul.f32 %v418, %v429
    %v458 = vmul.f32 %v419, %v429
    %v459 = vmul.f32 %v420, %v429
    %v460 = vmul.f32 %v421, %v429
    %v461 = vmul.f32 %v422, %v429
    %v462 = vmul.f32 %v423, %v429
    %v463 = vsel %vm182, %v431, 0.0
    %464 = vadd.xlane.f32.xlu0 %v463
    %v465 = vpop.xlane.xlu0 %464
    %v466 = vsel %vm182, %v432, 0.0
    %467 = vadd.xlane.f32.xlu0 %v466
    %v468 = vpop.xlane.xlu0 %467
    %v469 = vsel %vm182, %v433, 0.0
    %470 = vadd.xlane.f32.xlu0 %v469
    %v471 = vpop.xlane.xlu0 %470
    %v472 = vsel %vm182, %v434, 0.0
    %473 = vadd.xlane.f32.xlu0 %v472
    %v474 = vpop.xlane.xlu0 %473
    %v475 = vsel %vm182, %v435, 0.0
    %476 = vadd.xlane.f32.xlu0 %v475
    %v477 = vpop.xlane.xlu0 %476
    %v478 = vsel %vm182, %v436, 0.0
    %479 = vadd.xlane.f32.xlu0 %v478
    %v480 = vpop.xlane.xlu0 %479
    %v481 = vsel %vm182, %v437, 0.0
    %482 = vadd.xlane.f32.xlu0 %v481
    %v483 = vpop.xlane.xlu0 %482
    %v484 = vsel %vm182, %v438, 0.0
    %485 = vadd.xlane.f32.xlu0 %v484
    %v486 = vpop.xlane.xlu0 %485
    %v487 = vsel %vm182, %v439, 0.0
    %488 = vadd.xlane.f32.xlu0 %v487
    %v489 = vpop.xlane.xlu0 %488
    %v490 = vsel %vm182, %v440, 0.0
    %491 = vadd.xlane.f32.xlu0 %v490
    %v492 = vpop.xlane.xlu0 %491
    %v493 = vsel %vm182, %v441, 0.0
    %494 = vadd.xlane.f32.xlu0 %v493
    %v495 = vpop.xlane.xlu0 %494
    %v496 = vsel %vm182, %v442, 0.0
    %497 = vadd.xlane.f32.xlu0 %v496
    %v498 = vpop.xlane.xlu0 %497
    %v499 = vsel %vm182, %v443, 0.0
    %500 = vadd.xlane.f32.xlu0 %v499
    %v501 = vpop.xlane.xlu0 %500
    %v502 = vsel %vm182, %v444, 0.0
    %503 = vadd.xlane.f32.xlu0 %v502
    %v504 = vpop.xlane.xlu0 %503
    %v505 = vsel %vm182, %v445, 0.0
    %506 = vadd.xlane.f32.xlu0 %v505
    %v507 = vpop.xlane.xlu0 %506
    %v508 = vsel %vm182, %v446, 0.0
    %509 = vadd.xlane.f32.xlu0 %v508
    %v510 = vpop.xlane.xlu0 %509
    %v511 = vsel %vm182, %v447, 0.0
    %512 = vadd.xlane.f32.xlu0 %v511
    %v513 = vpop.xlane.xlu0 %512
    %v514 = vsel %vm182, %v448, 0.0
    %515 = vadd.xlane.f32.xlu0 %v514
    %v516 = vpop.xlane.xlu0 %515
    %v517 = vsel %vm182, %v449, 0.0
    %518 = vadd.xlane.f32.xlu0 %v517
    %v519 = vpop.xlane.xlu0 %518
    %v520 = vsel %vm182, %v450, 0.0
    %521 = vadd.xlane.f32.xlu0 %v520
    %v522 = vpop.xlane.xlu0 %521
    %v523 = vsel %vm182, %v451, 0.0
    %524 = vadd.xlane.f32.xlu0 %v523
    %v525 = vpop.xlane.xlu0 %524
    %v526 = vsel %vm182, %v452, 0.0
    %527 = vadd.xlane.f32.xlu0 %v526
    %v528 = vpop.xlane.xlu0 %527
    %v529 = vsel %vm182, %v453, 0.0
    %530 = vadd.xlane.f32.xlu0 %v529
    %v531 = vpop.xlane.xlu0 %530
    %v532 = vsel %vm182, %v454, 0.0
    %533 = vadd.xlane.f32.xlu0 %v532
    %v534 = vpop.xlane.xlu0 %533
    %v535 = vsel %vm182, %v455, 0.0
    %536 = vadd.xlane.f32.xlu0 %v535
    %v537 = vpop.xlane.xlu0 %536
    %v538 = vsel %vm182, %v456, 0.0
    %539 = vadd.xlane.f32.xlu0 %v538
    %v540 = vpop.xlane.xlu0 %539
    %v541 = vsel %vm182, %v457, 0.0
    %542 = vadd.xlane.f32.xlu0 %v541
    %v543 = vpop.xlane.xlu0 %542
    %v544 = vsel %vm182, %v458, 0.0
    %545 = vadd.xlane.f32.xlu0 %v544
    %v546 = vpop.xlane.xlu0 %545
    %v547 = vsel %vm182, %v459, 0.0
    %548 = vadd.xlane.f32.xlu0 %v547
    %v549 = vpop.xlane.xlu0 %548
    %v550 = vsel %vm182, %v460, 0.0
    %551 = vadd.xlane.f32.xlu0 %v550
    %v552 = vpop.xlane.xlu0 %551
    %v553 = vsel %vm182, %v461, 0.0
    %554 = vadd.xlane.f32.xlu0 %v553
    %v555 = vpop.xlane.xlu0 %554
    %v556 = vsel %vm182, %v462, 0.0
    %557 = vadd.xlane.f32.xlu0 %v556
    %v558 = vpop.xlane.xlu0 %557
    %v591 = vlaneseq
    %v592 = vand.u32 %v591, 127
    %v593 = vlaneseq
    %v594 = vshrl.u32 %v593, 7
    %v595 = vsub.s32 %v592, %v594
    %v596 = vrot.slane %v465, %v595
    %v597 = vadd.s32 %v592, 4294967288
    %v598 = vlaneseq
    %v599 = vshrl.u32 %v598, 7
    %v600 = vsub.s32 %v597, %v599
    %v601 = vrot.slane %v468, %v600
    %vm602 = vcmask 130112
    %v603 = vsel %vm602, %v601, %v596
    %v604 = vlaneseq
    %v605 = vshrl.u32 %v604, 7
    %v606 = vsub.s32 %v592, %v605
    %v607 = vrot.slane %v471, %v606
    %v608 = vlaneseq
    %v609 = vshrl.u32 %v608, 7
    %v610 = vsub.s32 %v597, %v609
    %v611 = vrot.slane %v474, %v610
    %v612 = vsel %vm602, %v611, %v607
    %v613 = vlaneseq
    %v614 = vshrl.u32 %v613, 7
    %v615 = vsub.s32 %v592, %v614
    %v616 = vrot.slane %v477, %v615
    %v617 = vlaneseq
    %v618 = vshrl.u32 %v617, 7
    %v619 = vsub.s32 %v597, %v618
    %v620 = vrot.slane %v480, %v619
    %v621 = vsel %vm602, %v620, %v616
    %v622 = vlaneseq
    %v623 = vshrl.u32 %v622, 7
    %v624 = vsub.s32 %v592, %v623
    %v625 = vrot.slane %v483, %v624
    %v626 = vlaneseq
    %v627 = vshrl.u32 %v626, 7
    %v628 = vsub.s32 %v597, %v627
    %v629 = vrot.slane %v486, %v628
    %v630 = vsel %vm602, %v629, %v625
    %v631 = vlaneseq
    %v632 = vshrl.u32 %v631, 7
    %v633 = vsub.s32 %v592, %v632
    %v634 = vrot.slane %v489, %v633
    %v635 = vlaneseq
    %v636 = vshrl.u32 %v635, 7
    %v637 = vsub.s32 %v597, %v636
    %v638 = vrot.slane %v492, %v637
    %v639 = vsel %vm602, %v638, %v634
    %v640 = vlaneseq
    %v641 = vshrl.u32 %v640, 7
    %v642 = vsub.s32 %v592, %v641
    %v643 = vrot.slane %v495, %v642
    %v644 = vlaneseq
    %v645 = vshrl.u32 %v644, 7
    %v646 = vsub.s32 %v597, %v645
    %v647 = vrot.slane %v498, %v646
    %v648 = vsel %vm602, %v647, %v643
    %v649 = vlaneseq
    %v650 = vshrl.u32 %v649, 7
    %v651 = vsub.s32 %v592, %v650
    %v652 = vrot.slane %v501, %v651
    %v653 = vlaneseq
    %v654 = vshrl.u32 %v653, 7
    %v655 = vsub.s32 %v597, %v654
    %v656 = vrot.slane %v504, %v655
    %v657 = vsel %vm602, %v656, %v652
    %v658 = vlaneseq
    %v659 = vshrl.u32 %v658, 7
    %v660 = vsub.s32 %v592, %v659
    %v661 = vrot.slane %v507, %v660
    %v662 = vlaneseq
    %v663 = vshrl.u32 %v662, 7
    %v664 = vsub.s32 %v597, %v663
    %v665 = vrot.slane %v510, %v664
    %v666 = vsel %vm602, %v665, %v661
    %v667 = vlaneseq
    %v668 = vshrl.u32 %v667, 7
    %v669 = vsub.s32 %v592, %v668
    %v670 = vrot.slane %v513, %v669
    %v671 = vlaneseq
    %v672 = vshrl.u32 %v671, 7
    %v673 = vsub.s32 %v597, %v672
    %v674 = vrot.slane %v516, %v673
    %v675 = vsel %vm602, %v674, %v670
    %v676 = vlaneseq
    %v677 = vshrl.u32 %v676, 7
    %v678 = vsub.s32 %v592, %v677
    %v679 = vrot.slane %v519, %v678
    %v680 = vlaneseq
    %v681 = vshrl.u32 %v680, 7
    %v682 = vsub.s32 %v597, %v681
    %v683 = vrot.slane %v522, %v682
    %v684 = vsel %vm602, %v683, %v679
    %v685 = vlaneseq
    %v686 = vshrl.u32 %v685, 7
    %v687 = vsub.s32 %v592, %v686
    %v688 = vrot.slane %v525, %v687
    %v689 = vlaneseq
    %v690 = vshrl.u32 %v689, 7
    %v691 = vsub.s32 %v597, %v690
    %v692 = vrot.slane %v528, %v691
    %v693 = vsel %vm602, %v692, %v688
    %v694 = vlaneseq
    %v695 = vshrl.u32 %v694, 7
    %v696 = vsub.s32 %v592, %v695
    %v697 = vrot.slane %v531, %v696
    %v698 = vlaneseq
    %v699 = vshrl.u32 %v698, 7
    %v700 = vsub.s32 %v597, %v699
    %v701 = vrot.slane %v534, %v700
    %v702 = vsel %vm602, %v701, %v697
    %v703 = vlaneseq
    %v704 = vshrl.u32 %v703, 7
    %v705 = vsub.s32 %v592, %v704
    %v706 = vrot.slane %v537, %v705
    %v707 = vlaneseq
    %v708 = vshrl.u32 %v707, 7
    %v709 = vsub.s32 %v597, %v708
    %v710 = vrot.slane %v540, %v709
    %v711 = vsel %vm602, %v710, %v706
    %v712 = vlaneseq
    %v713 = vshrl.u32 %v712, 7
    %v714 = vsub.s32 %v592, %v713
    %v715 = vrot.slane %v543, %v714
    %v716 = vlaneseq
    %v717 = vshrl.u32 %v716, 7
    %v718 = vsub.s32 %v597, %v717
    %v719 = vrot.slane %v546, %v718
    %v720 = vsel %vm602, %v719, %v715
    %v721 = vlaneseq
    %v722 = vshrl.u32 %v721, 7
    %v723 = vsub.s32 %v592, %v722
    %v724 = vrot.slane %v549, %v723
    %v725 = vlaneseq
    %v726 = vshrl.u32 %v725, 7
    %v727 = vsub.s32 %v597, %v726
    %v728 = vrot.slane %v552, %v727
    %v729 = vsel %vm602, %v728, %v724
    %v730 = vlaneseq
    %v731 = vshrl.u32 %v730, 7
    %v732 = vsub.s32 %v592, %v731
    %v733 = vrot.slane %v555, %v732
    %v734 = vlaneseq
    %v735 = vshrl.u32 %v734, 7
    %v736 = vsub.s32 %v597, %v735
    %v737 = vrot.slane %v558, %v736
    %v738 = vsel %vm602, %v737, %v733
    %vm739 = vcmask 1041409
    %v740 = vsel %vm739, %v612, %v603
    %vm741 = vcmask 1042434
    %v742 = vsel %vm741, %v621, %v740
    %vm743 = vcmask 1043459
    %v744 = vsel %vm743, %v630, %v742
    %vm745 = vcmask 1044484
    %v746 = vsel %vm745, %v639, %v744
    %vm747 = vcmask 1045509
    %v748 = vsel %vm747, %v648, %v746
    %vm749 = vcmask 1046534
    %v750 = vsel %vm749, %v657, %v748
    %vm751 = vcmask 1047559
    %v752 = vsel %vm751, %v666, %v750
    %v753 = vsel %vm739, %v684, %v675
    %v754 = vsel %vm741, %v693, %v753
    %v755 = vsel %vm743, %v702, %v754
    %v756 = vsel %vm745, %v711, %v755
    %v757 = vsel %vm747, %v720, %v756
    %v758 = vsel %vm749, %v729, %v757
    %v759 = vsel %vm751, %v738, %v758
    %vm762 = vcmask 130048
    %v763 = vsel %vm762, %v752, -inf
    %764 = vmax.xlane.f32.xlu0 %v763
    %v765 = vpop.xlane.xlu0 %764
    %v766 = vsel %vm762, %v759, -inf
    %767 = vmax.xlane.f32.xlu0 %v766
    %v768 = vpop.xlane.xlu0 %767
    %v771 = vlaneseq
    %v772 = vshrl.u32 %v771, 7
    %v773 = vsub.s32 0, %v772
    %v774 = vrot.slane %v765, %v773
    %v775 = vlaneseq
    %v776 = vshrl.u32 %v775, 7
    %v777 = vsub.s32 1, %v776
    %v778 = vrot.slane %v765, %v777
    %v779 = vlaneseq
    %v780 = vshrl.u32 %v779, 7
    %v781 = vsub.s32 2, %v780
    %v782 = vrot.slane %v765, %v781
    %v783 = vlaneseq
    %v784 = vshrl.u32 %v783, 7
    %v785 = vsub.s32 3, %v784
    %v786 = vrot.slane %v765, %v785
    %v787 = vlaneseq
    %v788 = vshrl.u32 %v787, 7
    %v789 = vsub.s32 4, %v788
    %v790 = vrot.slane %v765, %v789
    %v791 = vlaneseq
    %v792 = vshrl.u32 %v791, 7
    %v793 = vsub.s32 5, %v792
    %v794 = vrot.slane %v765, %v793
    %v795 = vlaneseq
    %v796 = vshrl.u32 %v795, 7
    %v797 = vsub.s32 6, %v796
    %v798 = vrot.slane %v765, %v797
    %v799 = vlaneseq
    %v800 = vshrl.u32 %v799, 7
    %v801 = vsub.s32 7, %v800
    %v802 = vrot.slane %v765, %v801
    %v803 = vlaneseq
    %v804 = vshrl.u32 %v803, 7
    %v805 = vsub.s32 0, %v804
    %v806 = vrot.slane %v768, %v805
    %v807 = vlaneseq
    %v808 = vshrl.u32 %v807, 7
    %v809 = vsub.s32 1, %v808
    %v810 = vrot.slane %v768, %v809
    %v811 = vlaneseq
    %v812 = vshrl.u32 %v811, 7
    %v813 = vsub.s32 2, %v812
    %v814 = vrot.slane %v768, %v813
    %v815 = vlaneseq
    %v816 = vshrl.u32 %v815, 7
    %v817 = vsub.s32 3, %v816
    %v818 = vrot.slane %v768, %v817
    %v819 = vlaneseq
    %v820 = vshrl.u32 %v819, 7
    %v821 = vsub.s32 4, %v820
    %v822 = vrot.slane %v768, %v821
    %v823 = vlaneseq
    %v824 = vshrl.u32 %v823, 7
    %v825 = vsub.s32 5, %v824
    %v826 = vrot.slane %v768, %v825
    %v827 = vlaneseq
    %v828 = vshrl.u32 %v827, 7
    %v829 = vsub.s32 6, %v828
    %v830 = vrot.slane %v768, %v829
    %v831 = vlaneseq
    %v832 = vshrl.u32 %v831, 7
    %v833 = vsub.s32 7, %v832
    %v834 = vrot.slane %v768, %v833
    %v851 = vsub.f32 %v465, %v774
    %v852 = vsub.f32 %v468, %v774
    %v853 = vsub.f32 %v471, %v778
    %v854 = vsub.f32 %v474, %v778
    %v855 = vsub.f32 %v477, %v782
    %v856 = vsub.f32 %v480, %v782
    %v857 = vsub.f32 %v483, %v786
    %v858 = vsub.f32 %v486, %v786
    %v859 = vsub.f32 %v489, %v790
    %v860 = vsub.f32 %v492, %v790
    %v861 = vsub.f32 %v495, %v794
    %v862 = vsub.f32 %v498, %v794
    %v863 = vsub.f32 %v501, %v798
    %v864 = vsub.f32 %v504, %v798
    %v865 = vsub.f32 %v507, %v802
    %v866 = vsub.f32 %v510, %v802
    %v867 = vsub.f32 %v513, %v806
    %v868 = vsub.f32 %v516, %v806
    %v869 = vsub.f32 %v519, %v810
    %v870 = vsub.f32 %v522, %v810
    %v871 = vsub.f32 %v525, %v814
    %v872 = vsub.f32 %v528, %v814
    %v873 = vsub.f32 %v531, %v818
    %v874 = vsub.f32 %v534, %v818
    %v875 = vsub.f32 %v537, %v822
    %v876 = vsub.f32 %v540, %v822
    %v877 = vsub.f32 %v543, %v826
    %v878 = vsub.f32 %v546, %v826
    %v879 = vsub.f32 %v549, %v830
    %v880 = vsub.f32 %v552, %v830
    %v881 = vsub.f32 %v555, %v834
    %v882 = vsub.f32 %v558, %v834
    %v883 = vmul.f32 %v851, 1.442695
    %v884 = vpow.pop %v883
    %v885 = vmul.f32 %v852, 1.442695
    %v886 = vpow.pop %v885
    %v887 = vmul.f32 %v853, 1.442695
    %v888 = vpow.pop %v887
    %v889 = vmul.f32 %v854, 1.442695
    %v890 = vpow.pop %v889
    %v891 = vmul.f32 %v855, 1.442695
    %v892 = vpow.pop %v891
    %v893 = vmul.f32 %v856, 1.442695
    %v894 = vpow.pop %v893
    %v895 = vmul.f32 %v857, 1.442695
    %v896 = vpow.pop %v895
    %v897 = vmul.f32 %v858, 1.442695
    %v898 = vpow.pop %v897
    %v899 = vmul.f32 %v859, 1.442695
    %v900 = vpow.pop %v899
    %v901 = vmul.f32 %v860, 1.442695
    %v902 = vpow.pop %v901
    %v903 = vmul.f32 %v861, 1.442695
    %v904 = vpow.pop %v903
    %v905 = vmul.f32 %v862, 1.442695
    %v906 = vpow.pop %v905
    %v907 = vmul.f32 %v863, 1.442695
    %v908 = vpow.pop %v907
    %v909 = vmul.f32 %v864, 1.442695
    %v910 = vpow.pop %v909
    %v911 = vmul.f32 %v865, 1.442695
    %v912 = vpow.pop %v911
    %v913 = vmul.f32 %v866, 1.442695
    %v914 = vpow.pop %v913
    %v915 = vmul.f32 %v867, 1.442695
    %v916 = vpow.pop %v915
    %v917 = vmul.f32 %v868, 1.442695
    %v918 = vpow.pop %v917
    %v919 = vmul.f32 %v869, 1.442695
    %v920 = vpow.pop %v919
    %v921 = vmul.f32 %v870, 1.442695
    %v922 = vpow.pop %v921
    %v923 = vmul.f32 %v871, 1.442695
    %v924 = vpow.pop %v923
    %v925 = vmul.f32 %v872, 1.442695
    %v926 = vpow.pop %v925
    %v927 = vmul.f32 %v873, 1.442695
    %v928 = vpow.pop %v927
    %v929 = vmul.f32 %v874, 1.442695
    %v930 = vpow.pop %v929
    %v931 = vmul.f32 %v875, 1.442695
    %v932 = vpow.pop %v931
    %v933 = vmul.f32 %v876, 1.442695
    %v934 = vpow.pop %v933
    %v935 = vmul.f32 %v877, 1.442695
    %v936 = vpow.pop %v935
    %v937 = vmul.f32 %v878, 1.442695
    %v938 = vpow.pop %v937
    %v939 = vmul.f32 %v879, 1.442695
    %v940 = vpow.pop %v939
    %v941 = vmul.f32 %v880, 1.442695
    %v942 = vpow.pop %v941
    %v943 = vmul.f32 %v881, 1.442695
    %v944 = vpow.pop %v943
    %v945 = vmul.f32 %v882, 1.442695
    %v946 = vpow.pop %v945
    %979 = vset.pattern.permute.xlu0 0
    %980 = vperm.xlu0 %979, %v884
    %v981 = vpop.permute.xlu0 %980
    %982 = vset.pattern.permute.xlu0 0
    %983 = vperm.xlu0 %982, %v886
    %v984 = vpop.permute.xlu0 %983
    %985 = vset.pattern.permute.xlu0 0
    %986 = vperm.xlu0 %985, %v888
    %v987 = vpop.permute.xlu0 %986
    %988 = vset.pattern.permute.xlu0 0
    %989 = vperm.xlu0 %988, %v890
    %v990 = vpop.permute.xlu0 %989
    %991 = vset.pattern.permute.xlu0 0
    %992 = vperm.xlu0 %991, %v892
    %v993 = vpop.permute.xlu0 %992
    %994 = vset.pattern.permute.xlu0 0
    %995 = vperm.xlu0 %994, %v894
    %v996 = vpop.permute.xlu0 %995
    %997 = vset.pattern.permute.xlu0 0
    %998 = vperm.xlu0 %997, %v896
    %v999 = vpop.permute.xlu0 %998
    %1000 = vset.pattern.permute.xlu0 0
    %1001 = vperm.xlu0 %1000, %v898
    %v1002 = vpop.permute.xlu0 %1001
    %1003 = vset.pattern.permute.xlu0 0
    %1004 = vperm.xlu0 %1003, %v900
    %v1005 = vpop.permute.xlu0 %1004
    %1006 = vset.pattern.permute.xlu0 0
    %1007 = vperm.xlu0 %1006, %v902
    %v1008 = vpop.permute.xlu0 %1007
    %1009 = vset.pattern.permute.xlu0 0
    %1010 = vperm.xlu0 %1009, %v904
    %v1011 = vpop.permute.xlu0 %1010
    %1012 = vset.pattern.permute.xlu0 0
    %1013 = vperm.xlu0 %1012, %v906
    %v1014 = vpop.permute.xlu0 %1013
    %1015 = vset.pattern.permute.xlu0 0
    %1016 = vperm.xlu0 %1015, %v908
    %v1017 = vpop.permute.xlu0 %1016
    %1018 = vset.pattern.permute.xlu0 0
    %1019 = vperm.xlu0 %1018, %v910
    %v1020 = vpop.permute.xlu0 %1019
    %1021 = vset.pattern.permute.xlu0 0
    %1022 = vperm.xlu0 %1021, %v912
    %v1023 = vpop.permute.xlu0 %1022
    %1024 = vset.pattern.permute.xlu0 0
    %1025 = vperm.xlu0 %1024, %v914
    %v1026 = vpop.permute.xlu0 %1025
    %1027 = vset.pattern.permute.xlu0 0
    %1028 = vperm.xlu0 %1027, %v916
    %v1029 = vpop.permute.xlu0 %1028
    %1030 = vset.pattern.permute.xlu0 0
    %1031 = vperm.xlu0 %1030, %v918
    %v1032 = vpop.permute.xlu0 %1031
    %1033 = vset.pattern.permute.xlu0 0
    %1034 = vperm.xlu0 %1033, %v920
    %v1035 = vpop.permute.xlu0 %1034
    %1036 = vset.pattern.permute.xlu0 0
    %1037 = vperm.xlu0 %1036, %v922
    %v1038 = vpop.permute.xlu0 %1037
    %1039 = vset.pattern.permute.xlu0 0
    %1040 = vperm.xlu0 %1039, %v924
    %v1041 = vpop.permute.xlu0 %1040
    %1042 = vset.pattern.permute.xlu0 0
    %1043 = vperm.xlu0 %1042, %v926
    %v1044 = vpop.permute.xlu0 %1043
    %1045 = vset.pattern.permute.xlu0 0
    %1046 = vperm.xlu0 %1045, %v928
    %v1047 = vpop.permute.xlu0 %1046
    %1048 = vset.pattern.permute.xlu0 0
    %1049 = vperm.xlu0 %1048, %v930
    %v1050 = vpop.permute.xlu0 %1049
    %1051 = vset.pattern.permute.xlu0 0
    %1052 = vperm.xlu0 %1051, %v932
    %v1053 = vpop.permute.xlu0 %1052
    %1054 = vset.pattern.permute.xlu0 0
    %1055 = vperm.xlu0 %1054, %v934
    %v1056 = vpop.permute.xlu0 %1055
    %1057 = vset.pattern.permute.xlu0 0
    %1058 = vperm.xlu0 %1057, %v936
    %v1059 = vpop.permute.xlu0 %1058
    %1060 = vset.pattern.permute.xlu0 0
    %1061 = vperm.xlu0 %1060, %v938
    %v1062 = vpop.permute.xlu0 %1061
    %1063 = vset.pattern.permute.xlu0 0
    %1064 = vperm.xlu0 %1063, %v940
    %v1065 = vpop.permute.xlu0 %1064
    %1066 = vset.pattern.permute.xlu0 0
    %1067 = vperm.xlu0 %1066, %v942
    %v1068 = vpop.permute.xlu0 %1067
    %1069 = vset.pattern.permute.xlu0 0
    %1070 = vperm.xlu0 %1069, %v944
    %v1071 = vpop.permute.xlu0 %1070
    %1072 = vset.pattern.permute.xlu0 0
    %1073 = vperm.xlu0 %1072, %v946
    %v1074 = vpop.permute.xlu0 %1073
    %v1075 = vlaneseq
    %v1076 = vshrl.u32 %v1075, 7
    %v1077 = vsub.s32 %v592, %v1076
    %v1078 = vrot.slane %v981, %v1077
    %v1079 = vlaneseq
    %v1080 = vshrl.u32 %v1079, 7
    %v1081 = vsub.s32 %v597, %v1080
    %v1082 = vrot.slane %v984, %v1081
    %v1083 = vsel %vm602, %v1082, %v1078
    %v1084 = vlaneseq
    %v1085 = vshrl.u32 %v1084, 7
    %v1086 = vsub.s32 %v592, %v1085
    %v1087 = vrot.slane %v987, %v1086
    %v1088 = vlaneseq
    %v1089 = vshrl.u32 %v1088, 7
    %v1090 = vsub.s32 %v597, %v1089
    %v1091 = vrot.slane %v990, %v1090
    %v1092 = vsel %vm602, %v1091, %v1087
    %v1093 = vlaneseq
    %v1094 = vshrl.u32 %v1093, 7
    %v1095 = vsub.s32 %v592, %v1094
    %v1096 = vrot.slane %v993, %v1095
    %v1097 = vlaneseq
    %v1098 = vshrl.u32 %v1097, 7
    %v1099 = vsub.s32 %v597, %v1098
    %v1100 = vrot.slane %v996, %v1099
    %v1101 = vsel %vm602, %v1100, %v1096
    %v1102 = vlaneseq
    %v1103 = vshrl.u32 %v1102, 7
    %v1104 = vsub.s32 %v592, %v1103
    %v1105 = vrot.slane %v999, %v1104
    %v1106 = vlaneseq
    %v1107 = vshrl.u32 %v1106, 7
    %v1108 = vsub.s32 %v597, %v1107
    %v1109 = vrot.slane %v1002, %v1108
    %v1110 = vsel %vm602, %v1109, %v1105
    %v1111 = vlaneseq
    %v1112 = vshrl.u32 %v1111, 7
    %v1113 = vsub.s32 %v592, %v1112
    %v1114 = vrot.slane %v1005, %v1113
    %v1115 = vlaneseq
    %v1116 = vshrl.u32 %v1115, 7
    %v1117 = vsub.s32 %v597, %v1116
    %v1118 = vrot.slane %v1008, %v1117
    %v1119 = vsel %vm602, %v1118, %v1114
    %v1120 = vlaneseq
    %v1121 = vshrl.u32 %v1120, 7
    %v1122 = vsub.s32 %v592, %v1121
    %v1123 = vrot.slane %v1011, %v1122
    %v1124 = vlaneseq
    %v1125 = vshrl.u32 %v1124, 7
    %v1126 = vsub.s32 %v597, %v1125
    %v1127 = vrot.slane %v1014, %v1126
    %v1128 = vsel %vm602, %v1127, %v1123
    %v1129 = vlaneseq
    %v1130 = vshrl.u32 %v1129, 7
    %v1131 = vsub.s32 %v592, %v1130
    %v1132 = vrot.slane %v1017, %v1131
    %v1133 = vlaneseq
    %v1134 = vshrl.u32 %v1133, 7
    %v1135 = vsub.s32 %v597, %v1134
    %v1136 = vrot.slane %v1020, %v1135
    %v1137 = vsel %vm602, %v1136, %v1132
    %v1138 = vlaneseq
    %v1139 = vshrl.u32 %v1138, 7
    %v1140 = vsub.s32 %v592, %v1139
    %v1141 = vrot.slane %v1023, %v1140
    %v1142 = vlaneseq
    %v1143 = vshrl.u32 %v1142, 7
    %v1144 = vsub.s32 %v597, %v1143
    %v1145 = vrot.slane %v1026, %v1144
    %v1146 = vsel %vm602, %v1145, %v1141
    %v1147 = vlaneseq
    %v1148 = vshrl.u32 %v1147, 7
    %v1149 = vsub.s32 %v592, %v1148
    %v1150 = vrot.slane %v1029, %v1149
    %v1151 = vlaneseq
    %v1152 = vshrl.u32 %v1151, 7
    %v1153 = vsub.s32 %v597, %v1152
    %v1154 = vrot.slane %v1032, %v1153
    %v1155 = vsel %vm602, %v1154, %v1150
    %v1156 = vlaneseq
    %v1157 = vshrl.u32 %v1156, 7
    %v1158 = vsub.s32 %v592, %v1157
    %v1159 = vrot.slane %v1035, %v1158
    %v1160 = vlaneseq
    %v1161 = vshrl.u32 %v1160, 7
    %v1162 = vsub.s32 %v597, %v1161
    %v1163 = vrot.slane %v1038, %v1162
    %v1164 = vsel %vm602, %v1163, %v1159
    %v1165 = vlaneseq
    %v1166 = vshrl.u32 %v1165, 7
    %v1167 = vsub.s32 %v592, %v1166
    %v1168 = vrot.slane %v1041, %v1167
    %v1169 = vlaneseq
    %v1170 = vshrl.u32 %v1169, 7
    %v1171 = vsub.s32 %v597, %v1170
    %v1172 = vrot.slane %v1044, %v1171
    %v1173 = vsel %vm602, %v1172, %v1168
    %v1174 = vlaneseq
    %v1175 = vshrl.u32 %v1174, 7
    %v1176 = vsub.s32 %v592, %v1175
    %v1177 = vrot.slane %v1047, %v1176
    %v1178 = vlaneseq
    %v1179 = vshrl.u32 %v1178, 7
    %v1180 = vsub.s32 %v597, %v1179
    %v1181 = vrot.slane %v1050, %v1180
    %v1182 = vsel %vm602, %v1181, %v1177
    %v1183 = vlaneseq
    %v1184 = vshrl.u32 %v1183, 7
    %v1185 = vsub.s32 %v592, %v1184
    %v1186 = vrot.slane %v1053, %v1185
    %v1187 = vlaneseq
    %v1188 = vshrl.u32 %v1187, 7
    %v1189 = vsub.s32 %v597, %v1188
    %v1190 = vrot.slane %v1056, %v1189
    %v1191 = vsel %vm602, %v1190, %v1186
    %v1192 = vlaneseq
    %v1193 = vshrl.u32 %v1192, 7
    %v1194 = vsub.s32 %v592, %v1193
    %v1195 = vrot.slane %v1059, %v1194
    %v1196 = vlaneseq
    %v1197 = vshrl.u32 %v1196, 7
    %v1198 = vsub.s32 %v597, %v1197
    %v1199 = vrot.slane %v1062, %v1198
    %v1200 = vsel %vm602, %v1199, %v1195
    %v1201 = vlaneseq
    %v1202 = vshrl.u32 %v1201, 7
    %v1203 = vsub.s32 %v592, %v1202
    %v1204 = vrot.slane %v1065, %v1203
    %v1205 = vlaneseq
    %v1206 = vshrl.u32 %v1205, 7
    %v1207 = vsub.s32 %v597, %v1206
    %v1208 = vrot.slane %v1068, %v1207
    %v1209 = vsel %vm602, %v1208, %v1204
    %v1210 = vlaneseq
    %v1211 = vshrl.u32 %v1210, 7
    %v1212 = vsub.s32 %v592, %v1211
    %v1213 = vrot.slane %v1071, %v1212
    %v1214 = vlaneseq
    %v1215 = vshrl.u32 %v1214, 7
    %v1216 = vsub.s32 %v597, %v1215
    %v1217 = vrot.slane %v1074, %v1216
    %v1218 = vsel %vm602, %v1217, %v1213
    %v1219 = vsel %vm739, %v1092, %v1083
    %v1220 = vsel %vm741, %v1101, %v1219
    %v1221 = vsel %vm743, %v1110, %v1220
    %v1222 = vsel %vm745, %v1119, %v1221
    %v1223 = vsel %vm747, %v1128, %v1222
    %v1224 = vsel %vm749, %v1137, %v1223
    %v1225 = vsel %vm751, %v1146, %v1224
    %v1226 = vsel %vm739, %v1164, %v1155
    %v1227 = vsel %vm741, %v1173, %v1226
    %v1228 = vsel %vm743, %v1182, %v1227
    %v1229 = vsel %vm745, %v1191, %v1228
    %v1230 = vsel %vm747, %v1200, %v1229
    %v1231 = vsel %vm749, %v1209, %v1230
    %v1232 = vsel %vm751, %v1218, %v1231
    %v1235 = vsel %vm762, %v1225, 0.0
    %1236 = vadd.xlane.f32.xlu0 %v1235
    %v1237 = vpop.xlane.xlu0 %1236
    %v1238 = vsel %vm762, %v1232, 0.0
    %1239 = vadd.xlane.f32.xlu0 %v1238
    %v1240 = vpop.xlane.xlu0 %1239
    %v1241 = vrcp.pop %v1237
    %v1242 = vrcp.pop %v1240
    %v1243 = vmul.f32 %v1237, %v1241
    %v1244 = vmul.f32 %v1240, %v1242
    %v1245 = vsub.f32 2.0, %v1243
    %v1246 = vsub.f32 2.0, %v1244
    %v1247 = vmul.f32 %v1241, %v1245
    %v1248 = vmul.f32 %v1242, %v1246
    %v1251 = vlaneseq
    %v1252 = vshrl.u32 %v1251, 7
    %v1253 = vsub.s32 0, %v1252
    %v1254 = vrot.slane %v1247, %v1253
    %v1255 = vlaneseq
    %v1256 = vshrl.u32 %v1255, 7
    %v1257 = vsub.s32 1, %v1256
    %v1258 = vrot.slane %v1247, %v1257
    %v1259 = vlaneseq
    %v1260 = vshrl.u32 %v1259, 7
    %v1261 = vsub.s32 2, %v1260
    %v1262 = vrot.slane %v1247, %v1261
    %v1263 = vlaneseq
    %v1264 = vshrl.u32 %v1263, 7
    %v1265 = vsub.s32 3, %v1264
    %v1266 = vrot.slane %v1247, %v1265
    %v1267 = vlaneseq
    %v1268 = vshrl.u32 %v1267, 7
    %v1269 = vsub.s32 4, %v1268
    %v1270 = vrot.slane %v1247, %v1269
    %v1271 = vlaneseq
    %v1272 = vshrl.u32 %v1271, 7
    %v1273 = vsub.s32 5, %v1272
    %v1274 = vrot.slane %v1247, %v1273
    %v1275 = vlaneseq
    %v1276 = vshrl.u32 %v1275, 7
    %v1277 = vsub.s32 6, %v1276
    %v1278 = vrot.slane %v1247, %v1277
    %v1279 = vlaneseq
    %v1280 = vshrl.u32 %v1279, 7
    %v1281 = vsub.s32 7, %v1280
    %v1282 = vrot.slane %v1247, %v1281
    %v1283 = vlaneseq
    %v1284 = vshrl.u32 %v1283, 7
    %v1285 = vsub.s32 0, %v1284
    %v1286 = vrot.slane %v1248, %v1285
    %v1287 = vlaneseq
    %v1288 = vshrl.u32 %v1287, 7
    %v1289 = vsub.s32 1, %v1288
    %v1290 = vrot.slane %v1248, %v1289
    %v1291 = vlaneseq
    %v1292 = vshrl.u32 %v1291, 7
    %v1293 = vsub.s32 2, %v1292
    %v1294 = vrot.slane %v1248, %v1293
    %v1295 = vlaneseq
    %v1296 = vshrl.u32 %v1295, 7
    %v1297 = vsub.s32 3, %v1296
    %v1298 = vrot.slane %v1248, %v1297
    %v1299 = vlaneseq
    %v1300 = vshrl.u32 %v1299, 7
    %v1301 = vsub.s32 4, %v1300
    %v1302 = vrot.slane %v1248, %v1301
    %v1303 = vlaneseq
    %v1304 = vshrl.u32 %v1303, 7
    %v1305 = vsub.s32 5, %v1304
    %v1306 = vrot.slane %v1248, %v1305
    %v1307 = vlaneseq
    %v1308 = vshrl.u32 %v1307, 7
    %v1309 = vsub.s32 6, %v1308
    %v1310 = vrot.slane %v1248, %v1309
    %v1311 = vlaneseq
    %v1312 = vshrl.u32 %v1311, 7
    %v1313 = vsub.s32 7, %v1312
    %v1314 = vrot.slane %v1248, %v1313
    %v1331 = vmul.f32 %v884, %v1254
    %v1332 = vmul.f32 %v886, %v1254
    %v1333 = vmul.f32 %v888, %v1258
    %v1334 = vmul.f32 %v890, %v1258
    %v1335 = vmul.f32 %v892, %v1262
    %v1336 = vmul.f32 %v894, %v1262
    %v1337 = vmul.f32 %v896, %v1266
    %v1338 = vmul.f32 %v898, %v1266
    %v1339 = vmul.f32 %v900, %v1270
    %v1340 = vmul.f32 %v902, %v1270
    %v1341 = vmul.f32 %v904, %v1274
    %v1342 = vmul.f32 %v906, %v1274
    %v1343 = vmul.f32 %v908, %v1278
    %v1344 = vmul.f32 %v910, %v1278
    %v1345 = vmul.f32 %v912, %v1282
    %v1346 = vmul.f32 %v914, %v1282
    %v1347 = vmul.f32 %v916, %v1286
    %v1348 = vmul.f32 %v918, %v1286
    %v1349 = vmul.f32 %v920, %v1290
    %v1350 = vmul.f32 %v922, %v1290
    %v1351 = vmul.f32 %v924, %v1294
    %v1352 = vmul.f32 %v926, %v1294
    %v1353 = vmul.f32 %v928, %v1298
    %v1354 = vmul.f32 %v930, %v1298
    %v1355 = vmul.f32 %v932, %v1302
    %v1356 = vmul.f32 %v934, %v1302
    %v1357 = vmul.f32 %v936, %v1306
    %v1358 = vmul.f32 %v938, %v1306
    %v1359 = vmul.f32 %v940, %v1310
    %v1360 = vmul.f32 %v942, %v1310
    %v1361 = vmul.f32 %v944, %v1314
    %v1362 = vmul.f32 %v946, %v1314
    %1364 = vset.pattern.permute.xlu0 0
    %1365 = vperm.xlu0 %1364, %v1331
    %v1366 = vpop.permute.xlu0 %1365
    %1369 = vset.pattern.permute.xlu0 0
    %1370 = vperm.xlu0 %1369, %v1332
    %v1371 = vpop.permute.xlu0 %1370
    %1374 = vset.pattern.permute.xlu0 0
    %1375 = vperm.xlu0 %1374, %v1333
    %v1376 = vpop.permute.xlu0 %1375
    %1379 = vset.pattern.permute.xlu0 0
    %1380 = vperm.xlu0 %1379, %v1334
    %v1381 = vpop.permute.xlu0 %1380
    %1384 = vset.pattern.permute.xlu0 0
    %1385 = vperm.xlu0 %1384, %v1335
    %v1386 = vpop.permute.xlu0 %1385
    %1389 = vset.pattern.permute.xlu0 0
    %1390 = vperm.xlu0 %1389, %v1336
    %v1391 = vpop.permute.xlu0 %1390
    %1394 = vset.pattern.permute.xlu0 0
    %1395 = vperm.xlu0 %1394, %v1337
    %v1396 = vpop.permute.xlu0 %1395
    %1399 = vset.pattern.permute.xlu0 0
    %1400 = vperm.xlu0 %1399, %v1338
    %v1401 = vpop.permute.xlu0 %1400
    %1404 = vset.pattern.permute.xlu0 0
    %1405 = vperm.xlu0 %1404, %v1339
    %v1406 = vpop.permute.xlu0 %1405
    %1409 = vset.pattern.permute.xlu0 0
    %1410 = vperm.xlu0 %1409, %v1340
    %v1411 = vpop.permute.xlu0 %1410
    %1414 = vset.pattern.permute.xlu0 0
    %1415 = vperm.xlu0 %1414, %v1341
    %v1416 = vpop.permute.xlu0 %1415
    %1419 = vset.pattern.permute.xlu0 0
    %1420 = vperm.xlu0 %1419, %v1342
    %v1421 = vpop.permute.xlu0 %1420
    %1424 = vset.pattern.permute.xlu0 0
    %1425 = vperm.xlu0 %1424, %v1343
    %v1426 = vpop.permute.xlu0 %1425
    %1429 = vset.pattern.permute.xlu0 0
    %1430 = vperm.xlu0 %1429, %v1344
    %v1431 = vpop.permute.xlu0 %1430
    %1434 = vset.pattern.permute.xlu0 0
    %1435 = vperm.xlu0 %1434, %v1345
    %v1436 = vpop.permute.xlu0 %1435
    %1439 = vset.pattern.permute.xlu0 0
    %1440 = vperm.xlu0 %1439, %v1346
    %v1441 = vpop.permute.xlu0 %1440
    %1444 = vset.pattern.permute.xlu0 0
    %1445 = vperm.xlu0 %1444, %v1347
    %v1446 = vpop.permute.xlu0 %1445
    %1449 = vset.pattern.permute.xlu0 0
    %1450 = vperm.xlu0 %1449, %v1348
    %v1451 = vpop.permute.xlu0 %1450
    %1454 = vset.pattern.permute.xlu0 0
    %1455 = vperm.xlu0 %1454, %v1349
    %v1456 = vpop.permute.xlu0 %1455
    %1459 = vset.pattern.permute.xlu0 0
    %1460 = vperm.xlu0 %1459, %v1350
    %v1461 = vpop.permute.xlu0 %1460
    %1464 = vset.pattern.permute.xlu0 0
    %1465 = vperm.xlu0 %1464, %v1351
    %v1466 = vpop.permute.xlu0 %1465
    %1469 = vset.pattern.permute.xlu0 0
    %1470 = vperm.xlu0 %1469, %v1352
    %v1471 = vpop.permute.xlu0 %1470
    %1474 = vset.pattern.permute.xlu0 0
    %1475 = vperm.xlu0 %1474, %v1353
    %v1476 = vpop.permute.xlu0 %1475
    %1479 = vset.pattern.permute.xlu0 0
    %1480 = vperm.xlu0 %1479, %v1354
    %v1481 = vpop.permute.xlu0 %1480
    %1484 = vset.pattern.permute.xlu0 0
    %1485 = vperm.xlu0 %1484, %v1355
    %v1486 = vpop.permute.xlu0 %1485
    %1489 = vset.pattern.permute.xlu0 0
    %1490 = vperm.xlu0 %1489, %v1356
    %v1491 = vpop.permute.xlu0 %1490
    %1494 = vset.pattern.permute.xlu0 0
    %1495 = vperm.xlu0 %1494, %v1357
    %v1496 = vpop.permute.xlu0 %1495
    %1499 = vset.pattern.permute.xlu0 0
    %1500 = vperm.xlu0 %1499, %v1358
    %v1501 = vpop.permute.xlu0 %1500
    %1504 = vset.pattern.permute.xlu0 0
    %1505 = vperm.xlu0 %1504, %v1359
    %v1506 = vpop.permute.xlu0 %1505
    %1509 = vset.pattern.permute.xlu0 0
    %1510 = vperm.xlu0 %1509, %v1360
    %v1511 = vpop.permute.xlu0 %1510
    %1514 = vset.pattern.permute.xlu0 0
    %1515 = vperm.xlu0 %1514, %v1361
    %v1516 = vpop.permute.xlu0 %1515
    %1519 = vset.pattern.permute.xlu0 0
    %1520 = vperm.xlu0 %1519, %v1362
    %v1521 = vpop.permute.xlu0 %1520
    %v1523 = vmul.f32 %v1366, %v392
    %v1524 = vmul.f32 %v1371, %v393
    %v1525 = vmul.f32 %v1376, %v394
    %v1526 = vmul.f32 %v1381, %v395
    %v1527 = vmul.f32 %v1386, %v396
    %v1528 = vmul.f32 %v1391, %v397
    %v1529 = vmul.f32 %v1396, %v398
    %v1530 = vmul.f32 %v1401, %v399
    %v1531 = vmul.f32 %v1406, %v400
    %v1532 = vmul.f32 %v1411, %v401
    %v1533 = vmul.f32 %v1416, %v402
    %v1534 = vmul.f32 %v1421, %v403
    %v1535 = vmul.f32 %v1426, %v404
    %v1536 = vmul.f32 %v1431, %v405
    %v1537 = vmul.f32 %v1436, %v406
    %v1538 = vmul.f32 %v1441, %v407
    %v1539 = vmul.f32 %v1446, %v408
    %v1540 = vmul.f32 %v1451, %v409
    %v1541 = vmul.f32 %v1456, %v410
    %v1542 = vmul.f32 %v1461, %v411
    %v1543 = vmul.f32 %v1466, %v412
    %v1544 = vmul.f32 %v1471, %v413
    %v1545 = vmul.f32 %v1476, %v414
    %v1546 = vmul.f32 %v1481, %v415
    %v1547 = vmul.f32 %v1486, %v416
    %v1548 = vmul.f32 %v1491, %v417
    %v1549 = vmul.f32 %v1496, %v418
    %v1550 = vmul.f32 %v1501, %v419
    %v1551 = vmul.f32 %v1506, %v420
    %v1552 = vmul.f32 %v1511, %v421
    %v1553 = vmul.f32 %v1516, %v422
    %v1554 = vmul.f32 %v1521, %v423
    %v1555 = vsel %vm182, %v1523, 0.0
    %v1556 = vsel %vm182, %v1524, 0.0
    %v1557 = vadd.f32 %v1555, %v1556
    %v1558 = vrot.slane %v1557, 4
    %v1559 = vadd.f32 %v1557, %v1558
    %v1560 = vrot.slane %v1559, 2
    %v1561 = vadd.f32 %v1559, %v1560
    %v1562 = vrot.slane %v1561, 1
    %v1563 = vadd.f32 %v1561, %v1562
    %v1564 = vsel %vm182, %v1525, 0.0
    %v1565 = vsel %vm182, %v1526, 0.0
    %v1566 = vadd.f32 %v1564, %v1565
    %v1567 = vrot.slane %v1566, 4
    %v1568 = vadd.f32 %v1566, %v1567
    %v1569 = vrot.slane %v1568, 2
    %v1570 = vadd.f32 %v1568, %v1569
    %v1571 = vrot.slane %v1570, 1
    %v1572 = vadd.f32 %v1570, %v1571
    %v1573 = vsel %vm182, %v1527, 0.0
    %v1574 = vsel %vm182, %v1528, 0.0
    %v1575 = vadd.f32 %v1573, %v1574
    %v1576 = vrot.slane %v1575, 4
    %v1577 = vadd.f32 %v1575, %v1576
    %v1578 = vrot.slane %v1577, 2
    %v1579 = vadd.f32 %v1577, %v1578
    %v1580 = vrot.slane %v1579, 1
    %v1581 = vadd.f32 %v1579, %v1580
    %v1582 = vsel %vm182, %v1529, 0.0
    %v1583 = vsel %vm182, %v1530, 0.0
    %v1584 = vadd.f32 %v1582, %v1583
    %v1585 = vrot.slane %v1584, 4
    %v1586 = vadd.f32 %v1584, %v1585
    %v1587 = vrot.slane %v1586, 2
    %v1588 = vadd.f32 %v1586, %v1587
    %v1589 = vrot.slane %v1588, 1
    %v1590 = vadd.f32 %v1588, %v1589
    %v1591 = vsel %vm182, %v1531, 0.0
    %v1592 = vsel %vm182, %v1532, 0.0
    %v1593 = vadd.f32 %v1591, %v1592
    %v1594 = vrot.slane %v1593, 4
    %v1595 = vadd.f32 %v1593, %v1594
    %v1596 = vrot.slane %v1595, 2
    %v1597 = vadd.f32 %v1595, %v1596
    %v1598 = vrot.slane %v1597, 1
    %v1599 = vadd.f32 %v1597, %v1598
    %v1600 = vsel %vm182, %v1533, 0.0
    %v1601 = vsel %vm182, %v1534, 0.0
    %v1602 = vadd.f32 %v1600, %v1601
    %v1603 = vrot.slane %v1602, 4
    %v1604 = vadd.f32 %v1602, %v1603
    %v1605 = vrot.slane %v1604, 2
    %v1606 = vadd.f32 %v1604, %v1605
    %v1607 = vrot.slane %v1606, 1
    %v1608 = vadd.f32 %v1606, %v1607
    %v1609 = vsel %vm182, %v1535, 0.0
    %v1610 = vsel %vm182, %v1536, 0.0
    %v1611 = vadd.f32 %v1609, %v1610
    %v1612 = vrot.slane %v1611, 4
    %v1613 = vadd.f32 %v1611, %v1612
    %v1614 = vrot.slane %v1613, 2
    %v1615 = vadd.f32 %v1613, %v1614
    %v1616 = vrot.slane %v1615, 1
    %v1617 = vadd.f32 %v1615, %v1616
    %v1618 = vsel %vm182, %v1537, 0.0
    %v1619 = vsel %vm182, %v1538, 0.0
    %v1620 = vadd.f32 %v1618, %v1619
    %v1621 = vrot.slane %v1620, 4
    %v1622 = vadd.f32 %v1620, %v1621
    %v1623 = vrot.slane %v1622, 2
    %v1624 = vadd.f32 %v1622, %v1623
    %v1625 = vrot.slane %v1624, 1
    %v1626 = vadd.f32 %v1624, %v1625
    %v1627 = vsel %vm182, %v1539, 0.0
    %v1628 = vsel %vm182, %v1540, 0.0
    %v1629 = vadd.f32 %v1627, %v1628
    %v1630 = vrot.slane %v1629, 4
    %v1631 = vadd.f32 %v1629, %v1630
    %v1632 = vrot.slane %v1631, 2
    %v1633 = vadd.f32 %v1631, %v1632
    %v1634 = vrot.slane %v1633, 1
    %v1635 = vadd.f32 %v1633, %v1634
    %v1636 = vsel %vm182, %v1541, 0.0
    %v1637 = vsel %vm182, %v1542, 0.0
    %v1638 = vadd.f32 %v1636, %v1637
    %v1639 = vrot.slane %v1638, 4
    %v1640 = vadd.f32 %v1638, %v1639
    %v1641 = vrot.slane %v1640, 2
    %v1642 = vadd.f32 %v1640, %v1641
    %v1643 = vrot.slane %v1642, 1
    %v1644 = vadd.f32 %v1642, %v1643
    %v1645 = vsel %vm182, %v1543, 0.0
    %v1646 = vsel %vm182, %v1544, 0.0
    %v1647 = vadd.f32 %v1645, %v1646
    %v1648 = vrot.slane %v1647, 4
    %v1649 = vadd.f32 %v1647, %v1648
    %v1650 = vrot.slane %v1649, 2
    %v1651 = vadd.f32 %v1649, %v1650
    %v1652 = vrot.slane %v1651, 1
    %v1653 = vadd.f32 %v1651, %v1652
    %v1654 = vsel %vm182, %v1545, 0.0
    %v1655 = vsel %vm182, %v1546, 0.0
    %v1656 = vadd.f32 %v1654, %v1655
    %v1657 = vrot.slane %v1656, 4
    %v1658 = vadd.f32 %v1656, %v1657
    %v1659 = vrot.slane %v1658, 2
    %v1660 = vadd.f32 %v1658, %v1659
    %v1661 = vrot.slane %v1660, 1
    %v1662 = vadd.f32 %v1660, %v1661
    %v1663 = vsel %vm182, %v1547, 0.0
    %v1664 = vsel %vm182, %v1548, 0.0
    %v1665 = vadd.f32 %v1663, %v1664
    %v1666 = vrot.slane %v1665, 4
    %v1667 = vadd.f32 %v1665, %v1666
    %v1668 = vrot.slane %v1667, 2
    %v1669 = vadd.f32 %v1667, %v1668
    %v1670 = vrot.slane %v1669, 1
    %v1671 = vadd.f32 %v1669, %v1670
    %v1672 = vsel %vm182, %v1549, 0.0
    %v1673 = vsel %vm182, %v1550, 0.0
    %v1674 = vadd.f32 %v1672, %v1673
    %v1675 = vrot.slane %v1674, 4
    %v1676 = vadd.f32 %v1674, %v1675
    %v1677 = vrot.slane %v1676, 2
    %v1678 = vadd.f32 %v1676, %v1677
    %v1679 = vrot.slane %v1678, 1
    %v1680 = vadd.f32 %v1678, %v1679
    %v1681 = vsel %vm182, %v1551, 0.0
    %v1682 = vsel %vm182, %v1552, 0.0
    %v1683 = vadd.f32 %v1681, %v1682
    %v1684 = vrot.slane %v1683, 4
    %v1685 = vadd.f32 %v1683, %v1684
    %v1686 = vrot.slane %v1685, 2
    %v1687 = vadd.f32 %v1685, %v1686
    %v1688 = vrot.slane %v1687, 1
    %v1689 = vadd.f32 %v1687, %v1688
    %v1690 = vsel %vm182, %v1553, 0.0
    %v1691 = vsel %vm182, %v1554, 0.0
    %v1692 = vadd.f32 %v1690, %v1691
    %v1693 = vrot.slane %v1692, 4
    %v1694 = vadd.f32 %v1692, %v1693
    %v1695 = vrot.slane %v1694, 2
    %v1696 = vadd.f32 %v1694, %v1695
    %v1697 = vrot.slane %v1696, 1
    %v1698 = vadd.f32 %v1696, %v1697
    %v1699 = vpack.c.bf16 %v1563, %v1563
    %v1700 = vpack.c.bf16 %v1572, %v1572
    %v1701 = vpack.c.bf16 %v1581, %v1581
    %v1702 = vpack.c.bf16 %v1590, %v1590
    %v1703 = vpack.c.bf16 %v1599, %v1599
    %v1704 = vpack.c.bf16 %v1608, %v1608
    %v1705 = vpack.c.bf16 %v1617, %v1617
    %v1706 = vpack.c.bf16 %v1626, %v1626
    %v1707 = vpack.c.bf16 %v1635, %v1635
    %v1708 = vpack.c.bf16 %v1644, %v1644
    %v1709 = vpack.c.bf16 %v1653, %v1653
    %v1710 = vpack.c.bf16 %v1662, %v1662
    %v1711 = vpack.c.bf16 %v1671, %v1671
    %v1712 = vpack.c.bf16 %v1680, %v1680
    %v1713 = vpack.c.bf16 %v1689, %v1689
    %v1714 = vpack.c.bf16 %v1698, %v1698
    %v1715 = vld [vmem:[%s4] sm:$0xf]
    %v1716 = vld [vmem:[%s4 + $0x4] sm:$0xf]
    %v1717 = vld [vmem:[%s4 + $0x8] sm:$0xf]
    %v1718 = vld [vmem:[%s4 + $0xc] sm:$0xf]
    %v1719 = vld [vmem:[%s4 + $0x10] sm:$0xf]
    %v1720 = vld [vmem:[%s4 + $0x14] sm:$0xf]
    %v1721 = vld [vmem:[%s4 + $0x18] sm:$0xf]
    %v1722 = vld [vmem:[%s4 + $0x1c] sm:$0xf]
    %v1723 = vld [vmem:[%s5] sm:$0x1]
    %v1725 = vlaneseq
    %v1726 = vshrl.u32 %v1725, 7
    %v1727 = vsub.s32 0, %v1726
    %v1728 = vrot.slane %v1723, %v1727
    %v1746 = vunpack.c.l.b16 %v1699
    %v1747 = vunpack.c.l.b16 %v1700
    %v1748 = vunpack.c.l.b16 %v1701
    %v1749 = vunpack.c.l.b16 %v1702
    %v1750 = vunpack.c.l.b16 %v1703
    %v1751 = vunpack.c.l.b16 %v1704
    %v1752 = vunpack.c.l.b16 %v1705
    %v1753 = vunpack.c.l.b16 %v1706
    %v1754 = vunpack.c.l.b16 %v1707
    %v1755 = vunpack.c.l.b16 %v1708
    %v1756 = vunpack.c.l.b16 %v1709
    %v1757 = vunpack.c.l.b16 %v1710
    %v1758 = vunpack.c.l.b16 %v1711
    %v1759 = vunpack.c.l.b16 %v1712
    %v1760 = vunpack.c.l.b16 %v1713
    %v1761 = vunpack.c.l.b16 %v1714
    %v1762 = vsel %vm739, %v1747, %v1746
    %v1763 = vsel %vm741, %v1748, %v1762
    %v1764 = vsel %vm743, %v1749, %v1763
    %v1765 = vsel %vm745, %v1750, %v1764
    %v1766 = vsel %vm747, %v1751, %v1765
    %v1767 = vsel %vm749, %v1752, %v1766
    %v1768 = vsel %vm751, %v1753, %v1767
    %v1769 = vsel %vm739, %v1755, %v1754
    %v1770 = vsel %vm741, %v1756, %v1769
    %v1771 = vsel %vm743, %v1757, %v1770
    %v1772 = vsel %vm745, %v1758, %v1771
    %v1773 = vsel %vm747, %v1759, %v1772
    %v1774 = vsel %vm749, %v1760, %v1773
    %v1775 = vsel %vm751, %v1761, %v1774
    %v1776 = vpack.c.b16 %v1775, %v1768
    %v1785 = vunpack.c.l.b16 %v1715
    %v1786 = vunpack.c.l.b16 %v1716
    %v1787 = vunpack.c.l.b16 %v1717
    %v1788 = vunpack.c.l.b16 %v1718
    %v1789 = vunpack.c.l.b16 %v1719
    %v1790 = vunpack.c.l.b16 %v1720
    %v1791 = vunpack.c.l.b16 %v1721
    %v1792 = vunpack.c.l.b16 %v1722
    %v1793 = vpack.c.b16 %v1786, %v1785
    %v1794 = vpack.c.b16 %v1788, %v1787
    %v1795 = vpack.c.b16 %v1790, %v1789
    %v1796 = vpack.c.b16 %v1792, %v1791
    %v1802 = vsel %vm182, %v1776, 0
    %1804 = vmatprep.subr.bf16.mxu0 0
    %1805 = vmatpush1.bf16.msra.mxu0 %v1793
    %1806 = vmatprep.subr.bf16.mxu0 0
    %1807 = vmatpush1.bf16.msra.mxu0 %v1794
    %1808 = vmatprep.subr.bf16.mxu0 0
    %1809 = vmatpush1.bf16.msra.mxu0 %v1795
    %1810 = vmatprep.subr.bf16.mxu0 0
    %1811 = vmatpush1.bf16.msra.mxu0 %v1796
    %1812 = vmatprep.subr.bf16.mxu0 0
    %1813 = vmatpush1.bf16.msra.mxu0 0
    %1814 = vmatprep.subr.bf16.mxu0 0
    %1815 = vmatpush1.bf16.msra.mxu0 0
    %1816 = vmatprep.subr.bf16.mxu0 0
    %1817 = vmatpush1.bf16.msra.mxu0 0
    %1818 = vmatprep.subr.bf16.mxu0 0
    %1819 = vmatpush1.bf16.msra.mxu0 0
    %1820 = vmatprep.subr.bf16.mxu0 0
    %1821 = vmatpush1.bf16.msra.mxu0 0
    %1822 = vmatprep.subr.bf16.mxu0 0
    %1823 = vmatpush1.bf16.msra.mxu0 0
    %1824 = vmatprep.subr.bf16.mxu0 0
    %1825 = vmatpush1.bf16.msra.mxu0 0
    %1826 = vmatprep.subr.bf16.mxu0 0
    %1827 = vmatpush1.bf16.msra.mxu0 0
    %1828 = vmatprep.subr.bf16.mxu0 0
    %1829 = vmatpush1.bf16.msra.mxu0 0
    %1830 = vmatprep.subr.bf16.mxu0 0
    %1831 = vmatpush1.bf16.msra.mxu0 0
    %1832 = vmatprep.subr.bf16.mxu0 0
    %1833 = vmatpush1.bf16.msra.mxu0 0
    %1834 = vmatprep.subr.bf16.mxu0 0
    %1835 = vmatpush1.bf16.msra.mxu0 0
    %1836 = vmatprep.mubr.bf16.mxu0 0
    %1837 = vmatmul.mubr.bf16.gmra.mrb[0].mxu0 %v1802
    %v1838 = vpop.f32.mrb[0].mxu0
    %v1839 = vadd.f32 %v1728, %v1838
    %v1840 = vpop.f32.mrb[0].mxu0
    %v1841 = vpop.f32.mrb[0].mxu0
    %v1842 = vadd.f32 %v1728, %v1841
    %v1843 = vpop.f32.mrb[0].mxu0
    %1844 = vdwg.mxu0
    %v1845 = vtanh.pop %v1839
    %v1846 = vtanh.pop %v1842
    %v1847 = vpack.c.bf16 %v1846, %v1845
    %v1848 = vld [vmem:[%s6] sm:$0xf]
    %v1849 = vld [vmem:[%s6 + $0x4] sm:$0xf]
    %v1850 = vld [vmem:[%s6 + $0x8] sm:$0xf]
    %v1851 = vld [vmem:[%s6 + $0xc] sm:$0xf]
    %v1852 = vld [vmem:[%s6 + $0x10] sm:$0xf]
    %v1853 = vld [vmem:[%s6 + $0x14] sm:$0xf]
    %v1854 = vld [vmem:[%s6 + $0x18] sm:$0xf]
    %v1855 = vld [vmem:[%s6 + $0x1c] sm:$0xf]
    %v1856 = vld [vmem:[%s7] sm:$0x1]
    %v1858 = vlaneseq
    %v1859 = vshrl.u32 %v1858, 7
    %v1860 = vsub.s32 0, %v1859
    %v1861 = vrot.slane %v1856, %v1860
    %v1871 = vunpack.c.l.b16 %v1848
    %v1872 = vunpack.c.l.b16 %v1849
    %v1873 = vunpack.c.l.b16 %v1850
    %v1874 = vunpack.c.l.b16 %v1851
    %v1875 = vunpack.c.l.b16 %v1852
    %v1876 = vunpack.c.l.b16 %v1853
    %v1877 = vunpack.c.l.b16 %v1854
    %v1878 = vunpack.c.l.b16 %v1855
    %v1879 = vpack.c.b16 %v1872, %v1871
    %v1880 = vpack.c.b16 %v1874, %v1873
    %v1881 = vpack.c.b16 %v1876, %v1875
    %v1882 = vpack.c.b16 %v1878, %v1877
    %v1888 = vsel %vm182, %v1847, 0
    %1890 = vmatprep.subr.bf16.mxu0 0
    %1891 = vmatpush1.bf16.msra.mxu0 %v1879
    %1892 = vmatprep.subr.bf16.mxu0 0
    %1893 = vmatpush1.bf16.msra.mxu0 %v1880
    %1894 = vmatprep.subr.bf16.mxu0 0
    %1895 = vmatpush1.bf16.msra.mxu0 %v1881
    %1896 = vmatprep.subr.bf16.mxu0 0
    %1897 = vmatpush1.bf16.msra.mxu0 %v1882
    %1898 = vmatprep.subr.bf16.mxu0 0
    %1899 = vmatpush1.bf16.msra.mxu0 0
    %1900 = vmatprep.subr.bf16.mxu0 0
    %1901 = vmatpush1.bf16.msra.mxu0 0
    %1902 = vmatprep.subr.bf16.mxu0 0
    %1903 = vmatpush1.bf16.msra.mxu0 0
    %1904 = vmatprep.subr.bf16.mxu0 0
    %1905 = vmatpush1.bf16.msra.mxu0 0
    %1906 = vmatprep.subr.bf16.mxu0 0
    %1907 = vmatpush1.bf16.msra.mxu0 0
    %1908 = vmatprep.subr.bf16.mxu0 0
    %1909 = vmatpush1.bf16.msra.mxu0 0
    %1910 = vmatprep.subr.bf16.mxu0 0
    %1911 = vmatpush1.bf16.msra.mxu0 0
    %1912 = vmatprep.subr.bf16.mxu0 0
    %1913 = vmatpush1.bf16.msra.mxu0 0
    %1914 = vmatprep.subr.bf16.mxu0 0
    %1915 = vmatpush1.bf16.msra.mxu0 0
    %1916 = vmatprep.subr.bf16.mxu0 0
    %1917 = vmatpush1.bf16.msra.mxu0 0
    %1918 = vmatprep.subr.bf16.mxu0 0
    %1919 = vmatpush1.bf16.msra.mxu0 0
    %1920 = vmatprep.subr.bf16.mxu0 0
    %1921 = vmatpush1.bf16.msra.mxu0 0
    %1922 = vmatprep.mubr.bf16.mxu0 0
    %1923 = vmatmul.mubr.bf16.gmra.mrb[0].mxu0 %v1888
    %v1924 = vpop.f32.mrb[0].mxu0
    %v1925 = vadd.f32 %v1861, %v1924
    %v1926 = vpop.f32.mrb[0].mxu0
    %v1927 = vpop.f32.mrb[0].mxu0
    %v1928 = vadd.f32 %v1861, %v1927
    %v1929 = vpop.f32.mrb[0].mxu0
    %1930 = vdwg.mxu0
    %v1931 = vlaneseq
    %v1932 = vshrl.u32 %v1931, 7
    %v1933 = vsub.s32 %v592, %v1932
    %v1934 = vrot.slane %v1366, %v1933
    %v1935 = vlaneseq
    %v1936 = vshrl.u32 %v1935, 7
    %v1937 = vsub.s32 %v597, %v1936
    %v1938 = vrot.slane %v1371, %v1937
    %v1939 = vsel %vm602, %v1938, %v1934
    %v1940 = vlaneseq
    %v1941 = vshrl.u32 %v1940, 7
    %v1942 = vsub.s32 %v592, %v1941
    %v1943 = vrot.slane %v1376, %v1942
    %v1944 = vlaneseq
    %v1945 = vshrl.u32 %v1944, 7
    %v1946 = vsub.s32 %v597, %v1945
    %v1947 = vrot.slane %v1381, %v1946
    %v1948 = vsel %vm602, %v1947, %v1943
    %v1949 = vlaneseq
    %v1950 = vshrl.u32 %v1949, 7
    %v1951 = vsub.s32 %v592, %v1950
    %v1952 = vrot.slane %v1386, %v1951
    %v1953 = vlaneseq
    %v1954 = vshrl.u32 %v1953, 7
    %v1955 = vsub.s32 %v597, %v1954
    %v1956 = vrot.slane %v1391, %v1955
    %v1957 = vsel %vm602, %v1956, %v1952
    %v1958 = vlaneseq
    %v1959 = vshrl.u32 %v1958, 7
    %v1960 = vsub.s32 %v592, %v1959
    %v1961 = vrot.slane %v1396, %v1960
    %v1962 = vlaneseq
    %v1963 = vshrl.u32 %v1962, 7
    %v1964 = vsub.s32 %v597, %v1963
    %v1965 = vrot.slane %v1401, %v1964
    %v1966 = vsel %vm602, %v1965, %v1961
    %v1967 = vlaneseq
    %v1968 = vshrl.u32 %v1967, 7
    %v1969 = vsub.s32 %v592, %v1968
    %v1970 = vrot.slane %v1406, %v1969
    %v1971 = vlaneseq
    %v1972 = vshrl.u32 %v1971, 7
    %v1973 = vsub.s32 %v597, %v1972
    %v1974 = vrot.slane %v1411, %v1973
    %v1975 = vsel %vm602, %v1974, %v1970
    %v1976 = vlaneseq
    %v1977 = vshrl.u32 %v1976, 7
    %v1978 = vsub.s32 %v592, %v1977
    %v1979 = vrot.slane %v1416, %v1978
    %v1980 = vlaneseq
    %v1981 = vshrl.u32 %v1980, 7
    %v1982 = vsub.s32 %v597, %v1981
    %v1983 = vrot.slane %v1421, %v1982
    %v1984 = vsel %vm602, %v1983, %v1979
    %v1985 = vlaneseq
    %v1986 = vshrl.u32 %v1985, 7
    %v1987 = vsub.s32 %v592, %v1986
    %v1988 = vrot.slane %v1426, %v1987
    %v1989 = vlaneseq
    %v1990 = vshrl.u32 %v1989, 7
    %v1991 = vsub.s32 %v597, %v1990
    %v1992 = vrot.slane %v1431, %v1991
    %v1993 = vsel %vm602, %v1992, %v1988
    %v1994 = vlaneseq
    %v1995 = vshrl.u32 %v1994, 7
    %v1996 = vsub.s32 %v592, %v1995
    %v1997 = vrot.slane %v1436, %v1996
    %v1998 = vlaneseq
    %v1999 = vshrl.u32 %v1998, 7
    %v2000 = vsub.s32 %v597, %v1999
    %v2001 = vrot.slane %v1441, %v2000
    %v2002 = vsel %vm602, %v2001, %v1997
    %v2003 = vlaneseq
    %v2004 = vshrl.u32 %v2003, 7
    %v2005 = vsub.s32 %v592, %v2004
    %v2006 = vrot.slane %v1446, %v2005
    %v2007 = vlaneseq
    %v2008 = vshrl.u32 %v2007, 7
    %v2009 = vsub.s32 %v597, %v2008
    %v2010 = vrot.slane %v1451, %v2009
    %v2011 = vsel %vm602, %v2010, %v2006
    %v2012 = vlaneseq
    %v2013 = vshrl.u32 %v2012, 7
    %v2014 = vsub.s32 %v592, %v2013
    %v2015 = vrot.slane %v1456, %v2014
    %v2016 = vlaneseq
    %v2017 = vshrl.u32 %v2016, 7
    %v2018 = vsub.s32 %v597, %v2017
    %v2019 = vrot.slane %v1461, %v2018
    %v2020 = vsel %vm602, %v2019, %v2015
    %v2021 = vlaneseq
    %v2022 = vshrl.u32 %v2021, 7
    %v2023 = vsub.s32 %v592, %v2022
    %v2024 = vrot.slane %v1466, %v2023
    %v2025 = vlaneseq
    %v2026 = vshrl.u32 %v2025, 7
    %v2027 = vsub.s32 %v597, %v2026
    %v2028 = vrot.slane %v1471, %v2027
    %v2029 = vsel %vm602, %v2028, %v2024
    %v2030 = vlaneseq
    %v2031 = vshrl.u32 %v2030, 7
    %v2032 = vsub.s32 %v592, %v2031
    %v2033 = vrot.slane %v1476, %v2032
    %v2034 = vlaneseq
    %v2035 = vshrl.u32 %v2034, 7
    %v2036 = vsub.s32 %v597, %v2035
    %v2037 = vrot.slane %v1481, %v2036
    %v2038 = vsel %vm602, %v2037, %v2033
    %v2039 = vlaneseq
    %v2040 = vshrl.u32 %v2039, 7
    %v2041 = vsub.s32 %v592, %v2040
    %v2042 = vrot.slane %v1486, %v2041
    %v2043 = vlaneseq
    %v2044 = vshrl.u32 %v2043, 7
    %v2045 = vsub.s32 %v597, %v2044
    %v2046 = vrot.slane %v1491, %v2045
    %v2047 = vsel %vm602, %v2046, %v2042
    %v2048 = vlaneseq
    %v2049 = vshrl.u32 %v2048, 7
    %v2050 = vsub.s32 %v592, %v2049
    %v2051 = vrot.slane %v1496, %v2050
    %v2052 = vlaneseq
    %v2053 = vshrl.u32 %v2052, 7
    %v2054 = vsub.s32 %v597, %v2053
    %v2055 = vrot.slane %v1501, %v2054
    %v2056 = vsel %vm602, %v2055, %v2051
    %v2057 = vlaneseq
    %v2058 = vshrl.u32 %v2057, 7
    %v2059 = vsub.s32 %v592, %v2058
    %v2060 = vrot.slane %v1506, %v2059
    %v2061 = vlaneseq
    %v2062 = vshrl.u32 %v2061, 7
    %v2063 = vsub.s32 %v597, %v2062
    %v2064 = vrot.slane %v1511, %v2063
    %v2065 = vsel %vm602, %v2064, %v2060
    %v2066 = vlaneseq
    %v2067 = vshrl.u32 %v2066, 7
    %v2068 = vsub.s32 %v592, %v2067
    %v2069 = vrot.slane %v1516, %v2068
    %v2070 = vlaneseq
    %v2071 = vshrl.u32 %v2070, 7
    %v2072 = vsub.s32 %v597, %v2071
    %v2073 = vrot.slane %v1521, %v2072
    %v2074 = vsel %vm602, %v2073, %v2069
    %v2075 = vsel %vm739, %v1948, %v1939
    %v2076 = vsel %vm741, %v1957, %v2075
    %v2077 = vsel %vm743, %v1966, %v2076
    %v2078 = vsel %vm745, %v1975, %v2077
    %v2079 = vsel %vm747, %v1984, %v2078
    %v2080 = vsel %vm749, %v1993, %v2079
    %v2081 = vsel %vm751, %v2002, %v2080
    %v2082 = vsel %vm739, %v2020, %v2011
    %v2083 = vsel %vm741, %v2029, %v2082
    %v2084 = vsel %vm743, %v2038, %v2083
    %v2085 = vsel %vm745, %v2047, %v2084
    %v2086 = vsel %vm747, %v2056, %v2085
    %v2087 = vsel %vm749, %v2065, %v2086
    %v2088 = vsel %vm751, %v2074, %v2087
    %2091 = vst.msk [vmem:[#allocation2] sm:$0xff] %vm762, %v2081
    %2092 = vst.msk [vmem:[#allocation2 + $0x8] sm:$0xff] %vm762, %v2088
    %2095 = vrot.lane.b32.xlu0 %v1925, 16
    %v2096 = vpop.permute.xlu0 %2095
    %2097 = vrot.lane.b32.xlu0 %v1928, 16
    %v2098 = vpop.permute.xlu0 %2097
    %vm2101 = vcmask 195712
    %2102 = vst.msk [vmem:[#allocation2] sm:$0xff] %vm2101, %v2096
    %2103 = vst.msk [vmem:[#allocation2 + $0x8] sm:$0xff] %vm2101, %v2098
    // Predicated region
    $region34: #{tpu_custom_call.1} parent=1 // pred_check
      _
    $region35: #{tpu_custom_call.1} parent=1 // pred_check_branch
      %2105 = sbr.rel (0) target = $region37
    $region36: #{tpu_custom_call.1} parent=1 // pred_region
      %s2107 = ssub.s32 256, 256
      %2108 = vsyncadd [#allocation3], %s2107
      %s2109 = sshll.u32 [#allocation2], 4
      %s2110 = int_to_ptr.vmem [resolvable:$true] %s2109
      %2115 = dma.vmem_to_hbm [thread:$0]  %s2110, 256, %s8, [#allocation3], 128, 128, 8
    $region37: #{tpu_custom_call.1} parent=1 // pred_fallthru
      _
    // Predicated region
    $region38: #{tpu_custom_call.1} parent=1 // pred_check
      _
    $region39: #{tpu_custom_call.1} parent=1 // pred_check_branch
      %2117 = sbr.rel (0) target = $region41
    $region40: #{tpu_custom_call.1} parent=1 // pred_region
      %2118 = dma.done [#allocation3], 256
    $region41: #{tpu_custom_call.1} parent=1 // pred_fallthru
      _
    %2119 = vsyncpa [#allocation3], 1

</llo_original>
